<compile_context>
chip_gen: v6e
topology: v6e:2x2x1
jax: 0.10.0
libtpu: 0.0.40
codegen_flags: <defaults>
</compile_context>

<pallas_src>
import math
from functools import partial

import numpy as np
import jax
import jax.numpy as jnp
from jax.experimental import pallas as pl
from jax.experimental.pallas import tpu as pltpu


def _round_up(x, m):
    return ((x + m - 1) // m) * m


# ----------------------------- kernel ---------------------------------------


def encoder_kernel(x_ref, w_emb_ref, b_emb_ref, w_ih_ref, b_gi_ref,
                   w_hh_ref, b_hn_ref, w_heads_ref, b_heads_ref,
                   heads_ref,
                   gi_sc, out_sc,
                   *, T, BT, HP, mm_dtype):
    f32 = jnp.float32

    # ---- stage 1: fused obs|act embedding (block-diagonal weight) + hoisted
    # ---- input-gate projection.  Two big MXU matmuls, result -> VMEM scratch.
    emb = jax.nn.relu(
        jnp.dot(x_ref[...], w_emb_ref[...], preferred_element_type=f32)
        + b_emb_ref[...])                                    # (T*BT, Demb) f32
    gi_sc[...] = (
        jnp.dot(emb.astype(mm_dtype), w_ih_ref[...],
                preferred_element_type=f32)
        + b_gi_ref[...])                                     # (T*BT, 3*HP) f32

    # ---- stage 2: GRU recurrence — only h @ W_hh stays serial ---------------
    w_hh = w_hh_ref[...]                                     # (HP, 3*HP) f32
    b_hn = jnp.broadcast_to(b_hn_ref[...], (BT, HP))         # hoisted broadcast

    def step(t, h):
        row = pl.multiple_of(t * BT, 8)
        gi_t = gi_sc[pl.ds(row, BT), :]                      # (BT, 3*HP)
        gh = jnp.dot(h, w_hh, preferred_element_type=f32)    # (BT, 3*HP)
        # gate slices are whole 128-lane tiles (HP is a multiple of 128)
        r = jax.nn.sigmoid(gi_t[:, :HP] + gh[:, :HP])
        z = jax.nn.sigmoid(gi_t[:, HP:2 * HP] + gh[:, HP:2 * HP])
        n = jnp.tanh(gi_t[:, 2 * HP:] + r * (gh[:, 2 * HP:] + b_hn))
        h = (1.0 - z) * n + z * h
        out_sc[pl.ds(row, BT), :] = h                        # unmasked vst
        return h

    jax.lax.fori_loop(0, T, step, jnp.zeros((BT, HP), f32), unroll=True)

    # ---- stage 3: fused mu / log_var head — one packed lane-dense matmul ----
    heads_ref[...] = (
        jnp.dot(out_sc[...].astype(mm_dtype), w_heads_ref[...],
                preferred_element_type=f32)
        + b_heads_ref[...])                                  # (T*BT, L2P) f32


# ----------------------------- wrapper ---------------------------------------


def encoder_forward(observations, actions, params, hidden_size,
                    block_b=128, matmul_dtype=jnp.bfloat16):
    f32 = jnp.float32
    bs, T, A, obs_dim = observations.shape
    act_dim = actions.shape[-1]
    H = hidden_size
    HP = _round_up(H, 128)                       # lane-padded hidden width
    L = params["w_mu"].shape[1]
    L2 = 2 * L
    L2P = _round_up(L2, 128)                     # lane-padded head width
    d_oe = params["w_obs"].shape[1]
    d_ae = params["w_act"].shape[1]
    Din = obs_dim + act_dim
    Demb = d_oe + d_ae

    # ---- batch tiling: grid over independent (bs * n_agents) rows -----------
    B = bs * A
    BT = max(8, min(_round_up(block_b, 8), _round_up(B, 8)))
    B_pad = _round_up(B, BT)
    n_tiles = B_pad // BT
    N_t = T * BT

    # ---- glue: weight packing (tiny one-off XLA ops) ------------------------
    # block-diagonal embedding weight: relu([obs|act] @ W_emb + b) == [oe|ae]
    w_emb = jnp.zeros((Din, Demb), f32)
    w_emb = w_emb.at[:obs_dim, :d_oe].set(params["w_obs"])
    w_emb = w_emb.at[obs_dim:, d_oe:].set(params["w_act"])
    b_emb = jnp.concatenate([params["b_obs"], params["b_act"]], axis=1)

    # per-gate lane-padded GRU weights: column layout [r | z | n], each HP wide
    w_ih_t, w_hh_t = params["w_ih_t"], params["w_hh_t"]
    b_ih, b_hh = params["b_ih"], params["b_hh"]

    def pad_gate_cols(w, rows_pad):
        rows = w.shape[0]
        out = jnp.zeros((rows_pad, 3 * HP), f32)
        for g in range(3):
            out = out.at[:rows, g * HP:g * HP + H].set(w[:, g * H:(g + 1) * H])
        return out

    w_ih_p = pad_gate_cols(w_ih_t, Demb)         # (Demb, 3*HP)
    w_hh_p = pad_gate_cols(w_hh_t, HP)           # (HP,   3*HP)

    b_rz = b_ih[:, :2 * H] + b_hh[:, :2 * H]     # r/z biases pre-combined
    b_gi = jnp.zeros((1, 3 * HP), f32)
    b_gi = b_gi.at[:, 0:H].set(b_rz[:, :H])
    b_gi = b_gi.at[:, HP:HP + H].set(b_rz[:, H:])
    b_gi = b_gi.at[:, 2 * HP:2 * HP + H].set(b_ih[:, 2 * H:])
    b_hn = jnp.zeros((1, HP), f32).at[:, :H].set(b_hh[:, 2 * H:])

    # fused mu / log_var head, lane-padded to L2P
    w_heads = jnp.zeros((HP, L2P), f32)
    w_heads = w_heads.at[:H, :L].set(params["w_mu"])
    w_heads = w_heads.at[:H, L:L2].set(params["w_var"])
    b_heads = jnp.zeros((1, L2P), f32)
    b_heads = b_heads.at[:, :L].set(params["b_mu"])
    b_heads = b_heads.at[:, L:L2].set(params["b_var"])

    # bf16 operands for the big matmuls (f32 accumulation inside the kernel)
    w_emb = w_emb.astype(matmul_dtype)
    w_ih_p = w_ih_p.astype(matmul_dtype)
    w_heads = w_heads.astype(matmul_dtype)

    # ---- glue: pack obs|act, time-major, then batch-tile-major layout -------
    x = jnp.concatenate([observations, actions], axis=-1)       # (bs,T,A,Din)
    x = jnp.transpose(x, (1, 0, 2, 3)).reshape(T, B, Din)       # (T,B,Din)
    if B_pad != B:
        x = jnp.pad(x, ((0, 0), (0, B_pad - B), (0, 0)))
    x = jnp.transpose(x.reshape(T, n_tiles, BT, Din), (1, 0, 2, 3))
    x = x.reshape(n_tiles * N_t, Din).astype(matmul_dtype)

    def full_spec(arr):
        nd = arr.ndim
        return pl.BlockSpec(arr.shape, lambda j, nd=nd: (0,) * nd)

    heads = pl.pallas_call(
        partial(encoder_kernel, T=T, BT=BT, HP=HP, mm_dtype=matmul_dtype),
        out_shape=jax.ShapeDtypeStruct((n_tiles * N_t, L2P), f32),
        grid_spec=pltpu.PrefetchScalarGridSpec(
            num_scalar_prefetch=0,
            grid=(n_tiles,),
            in_specs=[pl.BlockSpec((N_t, Din), lambda j: (j, 0)),
                      full_spec(w_emb), full_spec(b_emb),
                      full_spec(w_ih_p), full_spec(b_gi),
                      full_spec(w_hh_p), full_spec(b_hn),
                      full_spec(w_heads), full_spec(b_heads)],
            out_specs=pl.BlockSpec((N_t, L2P), lambda j: (j, 0)),
            scratch_shapes=[pltpu.VMEM((N_t, 3 * HP), f32),    # gi
                            pltpu.VMEM((N_t, HP), f32)]),      # GRU outputs
        compiler_params=pltpu.CompilerParams(
            dimension_semantics=("parallel",),
            vmem_limit_bytes=32 * 1024 * 1024),
    )(x, w_emb, b_emb, w_ih_p, b_gi, w_hh_p, b_hn, w_heads, b_heads)

    # ---- glue: undo tiling / padding, split mu & log_var ---------------------
    heads = jnp.transpose(heads.reshape(n_tiles, T, BT, L2P), (1, 0, 2, 3))
    heads = heads.reshape(T, B_pad, L2P)[:, :B, :L2]
    heads = jnp.transpose(heads.reshape(T, bs, A, L2), (1, 0, 2, 3))  # (bs,T,A,2L)
    mu = heads[..., :L]
    log_var = heads[..., L:]
    return mu, log_var


# ----------------------------- reference (pure JAX) ---------------------------


def encoder_reference(observations, actions, params, hidden_size):
    oe = jax.nn.relu(observations @ params["w_obs"] + params["b_obs"][0])
    ae = jax.nn.relu(actions @ params["w_act"] + params["b_act"][0])
    emb = jnp.concatenate([oe, ae], axis=-1)
    bs, T, A, D = emb.shape
    x = jnp.transpose(emb, (0, 2, 1, 3)).reshape(bs * A, T, D)
    H = hidden_size
    w_ih_t, w_hh_t = params["w_ih_t"], params["w_hh_t"]
    b_ih, b_hh = params["b_ih"][0], params["b_hh"][0]

    def step(h, xt):
        gi = xt @ w_ih_t + b_ih
        gh = h @ w_hh_t + b_hh
        r = jax.nn.sigmoid(gi[:, :H] + gh[:, :H])
        z = jax.nn.sigmoid(gi[:, H:2 * H] + gh[:, H:2 * H])
        n = jnp.tanh(gi[:, 2 * H:] + r * gh[:, 2 * H:])
        h_new = (1.0 - z) * n + z * h
        return h_new, h_new

    h0 = jnp.zeros((bs * A, H), jnp.float32)
    _, outs = jax.lax.scan(step, h0, jnp.transpose(x, (1, 0, 2)))  # (T, B, H)
    out = jnp.transpose(outs.reshape(T, bs, A, H), (1, 0, 2, 3))
    mu = out @ params["w_mu"] + params["b_mu"][0]
    log_var = out @ params["w_var"] + params["b_var"][0]
    return mu, log_var


# ----------------------------- params / main ----------------------------------


def init_params(key, obs_dim, act_dim, obs_emb, act_emb, hidden, latent):
    ks = jax.random.split(key, 12)

    def uni(k, shape, fan_in):
        bound = 1.0 / math.sqrt(fan_in)
        return jax.random.uniform(k, shape, jnp.float32, -bound, bound)

    return {
        # Linear weights stored already transposed: (in, out)
        "w_obs": uni(ks[0], (obs_dim, obs_emb), obs_dim),
        "b_obs": uni(ks[1], (1, obs_emb), obs_dim),
        "w_act": uni(ks[2], (act_dim, act_emb), act_dim),
        "b_act": uni(ks[3], (1, act_emb), act_dim),
        # GRU: PyTorch weight_ih (3H, D) / weight_hh (3H, H), stored transposed
        "w_ih_t": uni(ks[4], (obs_emb + act_emb, 3 * hidden), hidden),
        "w_hh_t": uni(ks[5], (hidden, 3 * hidden), hidden),
        "b_ih": uni(ks[6], (1, 3 * hidden), hidden),
        "b_hh": uni(ks[7], (1, 3 * hidden), hidden),
        "w_mu": uni(ks[8], (hidden, latent), hidden),
        "b_mu": uni(ks[9], (1, latent), hidden),
        "w_var": uni(ks[10], (hidden, latent), hidden),
        "b_var": uni(ks[11], (1, latent), hidden),
    }


if __name__ == "__main__":
    bs, seq, n_agents = 4, 8, 5
    obs_dim, act_dim = 12, 6
    obs_emb, act_emb = 16, 8
    hidden, latent = 32, 10

    key = jax.random.PRNGKey(0)
    k_obs, k_act, k_p = jax.random.split(key, 3)
    observations = jax.random.normal(k_obs, (bs, seq, n_agents, obs_dim), jnp.float32)
    actions = jax.random.normal(k_act, (bs, seq, n_agents, act_dim), jnp.float32)
    params = init_params(k_p, obs_dim, act_dim, obs_emb, act_emb, hidden, latent)

    # fast path: bf16 matmul operands, batch tile of 8 -> 3-point parallel grid
    fwd = jax.jit(partial(encoder_forward, hidden_size=hidden, block_b=8))
    mu, log_var = fwd(observations, actions, params)
    jax.block_until_ready((mu, log_var))

    mu_ref, lv_ref = encoder_reference(observations, actions, params, hidden)

    # exact structural check: same kernel with f32 matmul operands (single tile)
    fwd_f32 = jax.jit(partial(encoder_forward, hidden_size=hidden,
                              matmul_dtype=jnp.float32))
    mu32, lv32 = fwd_f32(observations, actions, params)
    jax.block_until_ready((mu32, lv32))
    np.testing.assert_allclose(np.asarray(mu32), np.asarray(mu_ref), atol=1e-5, rtol=1e-5)
    np.testing.assert_allclose(np.asarray(lv32), np.asarray(lv_ref), atol=1e-5, rtol=1e-5)

    # bf16 fast path: loose tolerance accounts for bf16 operand rounding only
    np.testing.assert_allclose(np.asarray(mu), np.asarray(mu_ref), atol=5e-2, rtol=5e-2)
    np.testing.assert_allclose(np.asarray(log_var), np.asarray(lv_ref), atol=5e-2, rtol=5e-2)

    print("KERNEL_OK")
</pallas_src>

<mosaic_0001>
module attributes {stable_mosaic.version = 11 : i64} {
  func.func @encoder_kernel(%arg0: i32, %arg1: memref<64x18xbf16, #tpu.memory_space<vmem>>, %arg2: memref<18x24xbf16, #tpu.memory_space<vmem>>, %arg3: memref<1x24xf32, #tpu.memory_space<vmem>>, %arg4: memref<24x384xbf16, #tpu.memory_space<vmem>>, %arg5: memref<1x384xf32, #tpu.memory_space<vmem>>, %arg6: memref<128x384xf32, #tpu.memory_space<vmem>>, %arg7: memref<1x128xf32, #tpu.memory_space<vmem>>, %arg8: memref<128x128xbf16, #tpu.memory_space<vmem>>, %arg9: memref<1x128xf32, #tpu.memory_space<vmem>>, %arg10: memref<64x128xf32, #tpu.memory_space<vmem>>, %arg11: memref<64x384xf32, #tpu.memory_space<vmem>>, %arg12: memref<64x128xf32, #tpu.memory_space<vmem>>) attributes {dimension_semantics = [#tpu.dimension_semantics<parallel>], iteration_bounds = array<i64: 3>, scalar_prefetch = 0 : i64, scratch_operands = 2 : i64, tpu.core_type = #tpu.core_type<tc>, window_params = [{transform_indices = @transform_0, window_bounds = array<i64: 64, 18>}, {pipeline_mode = #tpu.pipeline_mode<synchronous>, transform_indices = @transform_1, window_bounds = array<i64: 18, 24>}, {pipeline_mode = #tpu.pipeline_mode<synchronous>, transform_indices = @transform_2, window_bounds = array<i64: 1, 24>}, {pipeline_mode = #tpu.pipeline_mode<synchronous>, transform_indices = @transform_3, window_bounds = array<i64: 24, 384>}, {pipeline_mode = #tpu.pipeline_mode<synchronous>, transform_indices = @transform_4, window_bounds = array<i64: 1, 384>}, {pipeline_mode = #tpu.pipeline_mode<synchronous>, transform_indices = @transform_5, window_bounds = array<i64: 128, 384>}, {pipeline_mode = #tpu.pipeline_mode<synchronous>, transform_indices = @transform_6, window_bounds = array<i64: 1, 128>}, {pipeline_mode = #tpu.pipeline_mode<synchronous>, transform_indices = @transform_7, window_bounds = array<i64: 128, 128>}, {pipeline_mode = #tpu.pipeline_mode<synchronous>, transform_indices = @transform_8, window_bounds = array<i64: 1, 128>}, {transform_indices = @transform_9, window_bounds = array<i64: 64, 128>}]} {
    %c0 = arith.constant 0 : index
    %c0_0 = arith.constant 0 : index
    %0 = vector.load %arg1[%c0, %c0_0] : memref<64x18xbf16, #tpu.memory_space<vmem>>, vector<64x18xbf16>
    %c0_1 = arith.constant 0 : index
    %c0_2 = arith.constant 0 : index
    %1 = vector.load %arg2[%c0_1, %c0_2] : memref<18x24xbf16, #tpu.memory_space<vmem>>, vector<18x24xbf16>
    %cst = arith.constant dense<0.000000e+00> : vector<64x24xf32>
    %2 = tpu.matmul %0, %1, %cst {dimension_numbers = #tpu.dot_dimension_numbers<[1], [0], [0], [1], [0, 0, 1, 1], [], []>} : vector<64x18xbf16>, vector<18x24xbf16>, vector<64x24xf32> -> vector<64x24xf32>
    %c0_3 = arith.constant 0 : index
    %c0_4 = arith.constant 0 : index
    %3 = vector.load %arg3[%c0_3, %c0_4] : memref<1x24xf32, #tpu.memory_space<vmem>>, vector<1x24xf32>
    %4 = vector.broadcast %3 : vector<1x24xf32> to vector<64x24xf32>
    %5 = arith.addf %2, %4 : vector<64x24xf32>
    %cst_5 = arith.constant 0.000000e+00 : f32
    %6 = vector.broadcast %cst_5 : f32 to vector<64x24xf32>
    %7 = arith.maximumf %5, %6 : vector<64x24xf32>
    %8 = arith.truncf %7 : vector<64x24xf32> to vector<64x24xbf16>
    %c0_6 = arith.constant 0 : index
    %c0_7 = arith.constant 0 : index
    %9 = vector.load %arg4[%c0_6, %c0_7] : memref<24x384xbf16, #tpu.memory_space<vmem>>, vector<24x384xbf16>
    %cst_8 = arith.constant dense<0.000000e+00> : vector<64x384xf32>
    %10 = tpu.matmul %8, %9, %cst_8 {dimension_numbers = #tpu.dot_dimension_numbers<[1], [0], [0], [1], [0, 0, 1, 1], [], []>} : vector<64x24xbf16>, vector<24x384xbf16>, vector<64x384xf32> -> vector<64x384xf32>
    %c0_9 = arith.constant 0 : index
    %c0_10 = arith.constant 0 : index
    %11 = vector.load %arg5[%c0_9, %c0_10] : memref<1x384xf32, #tpu.memory_space<vmem>>, vector<1x384xf32>
    %12 = vector.broadcast %11 : vector<1x384xf32> to vector<64x384xf32>
    %13 = arith.addf %10, %12 : vector<64x384xf32>
    %c0_11 = arith.constant 0 : index
    %c0_12 = arith.constant 0 : index
    %14 = vector.load %arg11[%c0_11, %c0_12] : memref<64x384xf32, #tpu.memory_space<vmem>>, vector<64x384xf32>
    tpu.vector_store %arg11[%c0_11, %c0_12], %13 {strides = array<i32>} : memref<64x384xf32, #tpu.memory_space<vmem>>, vector<64x384xf32>,
    %c0_13 = arith.constant 0 : index
    %c0_14 = arith.constant 0 : index
    %15 = vector.load %arg6[%c0_13, %c0_14] : memref<128x384xf32, #tpu.memory_space<vmem>>, vector<128x384xf32>
    %c0_15 = arith.constant 0 : index
    %c0_16 = arith.constant 0 : index
    %16 = vector.load %arg7[%c0_15, %c0_16] : memref<1x128xf32, #tpu.memory_space<vmem>>, vector<1x128xf32>
    %17 = vector.shape_cast %16 : vector<1x128xf32> to vector<1x128xf32>
    %18 = vector.broadcast %17 : vector<1x128xf32> to vector<8x128xf32>
    %cst_17 = arith.constant 0.000000e+00 : f32
    %19 = vector.broadcast %cst_17 : f32 to vector<8x128xf32>
    %c0_i32 = arith.constant 0 : i32
    %c8_i32 = arith.constant 8 : i32
    %20 = arith.muli %c0_i32, %c8_i32 : i32
    %21 = tpu.assume_multiple %20, 8 : i32
    %22 = arith.index_cast %21 : i32 to index
    %c0_18 = arith.constant 0 : index
    %23 = vector.load %arg11[%22, %c0_18] : memref<64x384xf32, #tpu.memory_space<vmem>>, vector<8x384xf32>
    %cst_19 = arith.constant dense<0.000000e+00> : vector<8x384xf32>
    %24 = tpu.matmul %19, %15, %cst_19 {dimension_numbers = #tpu.dot_dimension_numbers<[1], [0], [0], [1], [0, 0, 1, 1], [], []>} : vector<8x128xf32>, vector<128x384xf32>, vector<8x384xf32> -> vector<8x384xf32>
    %25 = vector.extract_strided_slice %23 {offsets = [0, 0], sizes = [8, 128], strides = [1, 1]} : vector<8x384xf32> to vector<8x128xf32>
    %26 = vector.extract_strided_slice %24 {offsets = [0, 0], sizes = [8, 128], strides = [1, 1]} : vector<8x384xf32> to vector<8x128xf32>
    %27 = arith.addf %25, %26 : vector<8x128xf32>
    %28 = arith.negf %27 : vector<8x128xf32>
    %29 = math.exp %28 : vector<8x128xf32>
    %cst_20 = arith.constant 1.000000e+00 : f32
    %30 = vector.broadcast %cst_20 : f32 to vector<8x128xf32>
    %31 = arith.addf %30, %29 : vector<8x128xf32>
    %32 = arith.divf %30, %31 : vector<8x128xf32>
    %33 = vector.extract_strided_slice %23 {offsets = [0, 128], sizes = [8, 128], strides = [1, 1]} : vector<8x384xf32> to vector<8x128xf32>
    %34 = vector.extract_strided_slice %24 {offsets = [0, 128], sizes = [8, 128], strides = [1, 1]} : vector<8x384xf32> to vector<8x128xf32>
    %35 = arith.addf %33, %34 : vector<8x128xf32>
    %36 = arith.negf %35 : vector<8x128xf32>
    %37 = math.exp %36 : vector<8x128xf32>
    %cst_21 = arith.constant 1.000000e+00 : f32
    %38 = vector.broadcast %cst_21 : f32 to vector<8x128xf32>
    %39 = arith.addf %38, %37 : vector<8x128xf32>
    %40 = arith.divf %38, %39 : vector<8x128xf32>
    %41 = vector.extract_strided_slice %23 {offsets = [0, 256], sizes = [8, 128], strides = [1, 1]} : vector<8x384xf32> to vector<8x128xf32>
    %42 = vector.extract_strided_slice %24 {offsets = [0, 256], sizes = [8, 128], strides = [1, 1]} : vector<8x384xf32> to vector<8x128xf32>
    %43 = arith.addf %42, %18 : vector<8x128xf32>
    %44 = arith.mulf %32, %43 : vector<8x128xf32>
    %45 = arith.addf %41, %44 : vector<8x128xf32>
    %46 = math.tanh %45 : vector<8x128xf32>
    %cst_22 = arith.constant 1.000000e+00 : f32
    %47 = vector.broadcast %cst_22 : f32 to vector<8x128xf32>
    %48 = arith.subf %47, %40 : vector<8x128xf32>
    %49 = arith.mulf %48, %46 : vector<8x128xf32>
    %50 = arith.mulf %40, %19 : vector<8x128xf32>
    %51 = arith.addf %49, %50 : vector<8x128xf32>
    %52 = arith.index_cast %21 : i32 to index
    %c0_23 = arith.constant 0 : index
    %53 = vector.load %arg12[%52, %c0_23] : memref<64x128xf32, #tpu.memory_space<vmem>>, vector<8x128xf32>
    tpu.vector_store %arg12[%52, %c0_23], %51 {strides = array<i32>} : memref<64x128xf32, #tpu.memory_space<vmem>>, vector<8x128xf32>,
    %c1_i32 = arith.constant 1 : i32
    %c8_i32_24 = arith.constant 8 : i32
    %54 = arith.muli %c1_i32, %c8_i32_24 : i32
    %55 = tpu.assume_multiple %54, 8 : i32
    %56 = arith.index_cast %55 : i32 to index
    %c0_25 = arith.constant 0 : index
    %57 = vector.load %arg11[%56, %c0_25] : memref<64x384xf32, #tpu.memory_space<vmem>>, vector<8x384xf32>
    %cst_26 = arith.constant dense<0.000000e+00> : vector<8x384xf32>
    %58 = tpu.matmul %51, %15, %cst_26 {dimension_numbers = #tpu.dot_dimension_numbers<[1], [0], [0], [1], [0, 0, 1, 1], [], []>} : vector<8x128xf32>, vector<128x384xf32>, vector<8x384xf32> -> vector<8x384xf32>
    %59 = vector.extract_strided_slice %57 {offsets = [0, 0], sizes = [8, 128], strides = [1, 1]} : vector<8x384xf32> to vector<8x128xf32>
    %60 = vector.extract_strided_slice %58 {offsets = [0, 0], sizes = [8, 128], strides = [1, 1]} : vector<8x384xf32> to vector<8x128xf32>
    %61 = arith.addf %59, %60 : vector<8x128xf32>
    %62 = arith.negf %61 : vector<8x128xf32>
    %63 = math.exp %62 : vector<8x128xf32>
    %cst_27 = arith.constant 1.000000e+00 : f32
    %64 = vector.broadcast %cst_27 : f32 to vector<8x128xf32>
    %65 = arith.addf %64, %63 : vector<8x128xf32>
    %66 = arith.divf %64, %65 : vector<8x128xf32>
    %67 = vector.extract_strided_slice %57 {offsets = [0, 128], sizes = [8, 128], strides = [1, 1]} : vector<8x384xf32> to vector<8x128xf32>
    %68 = vector.extract_strided_slice %58 {offsets = [0, 128], sizes = [8, 128], strides = [1, 1]} : vector<8x384xf32> to vector<8x128xf32>
    %69 = arith.addf %67, %68 : vector<8x128xf32>
    %70 = arith.negf %69 : vector<8x128xf32>
    %71 = math.exp %70 : vector<8x128xf32>
    %cst_28 = arith.constant 1.000000e+00 : f32
    %72 = vector.broadcast %cst_28 : f32 to vector<8x128xf32>
    %73 = arith.addf %72, %71 : vector<8x128xf32>
    %74 = arith.divf %72, %73 : vector<8x128xf32>
    %75 = vector.extract_strided_slice %57 {offsets = [0, 256], sizes = [8, 128], strides = [1, 1]} : vector<8x384xf32> to vector<8x128xf32>
    %76 = vector.extract_strided_slice %58 {offsets = [0, 256], sizes = [8, 128], strides = [1, 1]} : vector<8x384xf32> to vector<8x128xf32>
    %77 = arith.addf %76, %18 : vector<8x128xf32>
    %78 = arith.mulf %66, %77 : vector<8x128xf32>
    %79 = arith.addf %75, %78 : vector<8x128xf32>
    %80 = math.tanh %79 : vector<8x128xf32>
    %cst_29 = arith.constant 1.000000e+00 : f32
    %81 = vector.broadcast %cst_29 : f32 to vector<8x128xf32>
    %82 = arith.subf %81, %74 : vector<8x128xf32>
    %83 = arith.mulf %82, %80 : vector<8x128xf32>
    %84 = arith.mulf %74, %51 : vector<8x128xf32>
    %85 = arith.addf %83, %84 : vector<8x128xf32>
    %86 = arith.index_cast %55 : i32 to index
    %c0_30 = arith.constant 0 : index
    %87 = vector.load %arg12[%86, %c0_30] : memref<64x128xf32, #tpu.memory_space<vmem>>, vector<8x128xf32>
    tpu.vector_store %arg12[%86, %c0_30], %85 {strides = array<i32>} : memref<64x128xf32, #tpu.memory_space<vmem>>, vector<8x128xf32>,
    %c2_i32 = arith.constant 2 : i32
    %c8_i32_31 = arith.constant 8 : i32
    %88 = arith.muli %c2_i32, %c8_i32_31 : i32
    %89 = tpu.assume_multiple %88, 8 : i32
    %90 = arith.index_cast %89 : i32 to index
    %c0_32 = arith.constant 0 : index
    %91 = vector.load %arg11[%90, %c0_32] : memref<64x384xf32, #tpu.memory_space<vmem>>, vector<8x384xf32>
    %cst_33 = arith.constant dense<0.000000e+00> : vector<8x384xf32>
    %92 = tpu.matmul %85, %15, %cst_33 {dimension_numbers = #tpu.dot_dimension_numbers<[1], [0], [0], [1], [0, 0, 1, 1], [], []>} : vector<8x128xf32>, vector<128x384xf32>, vector<8x384xf32> -> vector<8x384xf32>
    %93 = vector.extract_strided_slice %91 {offsets = [0, 0], sizes = [8, 128], strides = [1, 1]} : vector<8x384xf32> to vector<8x128xf32>
    %94 = vector.extract_strided_slice %92 {offsets = [0, 0], sizes = [8, 128], strides = [1, 1]} : vector<8x384xf32> to vector<8x128xf32>
    %95 = arith.addf %93, %94 : vector<8x128xf32>
    %96 = arith.negf %95 : vector<8x128xf32>
    %97 = math.exp %96 : vector<8x128xf32>
    %cst_34 = arith.constant 1.000000e+00 : f32
    %98 = vector.broadcast %cst_34 : f32 to vector<8x128xf32>
    %99 = arith.addf %98, %97 : vector<8x128xf32>
    %100 = arith.divf %98, %99 : vector<8x128xf32>
    %101 = vector.extract_strided_slice %91 {offsets = [0, 128], sizes = [8, 128], strides = [1, 1]} : vector<8x384xf32> to vector<8x128xf32>
    %102 = vector.extract_strided_slice %92 {offsets = [0, 128], sizes = [8, 128], strides = [1, 1]} : vector<8x384xf32> to vector<8x128xf32>
    %103 = arith.addf %101, %102 : vector<8x128xf32>
    %104 = arith.negf %103 : vector<8x128xf32>
    %105 = math.exp %104 : vector<8x128xf32>
    %cst_35 = arith.constant 1.000000e+00 : f32
    %106 = vector.broadcast %cst_35 : f32 to vector<8x128xf32>
    %107 = arith.addf %106, %105 : vector<8x128xf32>
    %108 = arith.divf %106, %107 : vector<8x128xf32>
    %109 = vector.extract_strided_slice %91 {offsets = [0, 256], sizes = [8, 128], strides = [1, 1]} : vector<8x384xf32> to vector<8x128xf32>
    %110 = vector.extract_strided_slice %92 {offsets = [0, 256], sizes = [8, 128], strides = [1, 1]} : vector<8x384xf32> to vector<8x128xf32>
    %111 = arith.addf %110, %18 : vector<8x128xf32>
    %112 = arith.mulf %100, %111 : vector<8x128xf32>
    %113 = arith.addf %109, %112 : vector<8x128xf32>
    %114 = math.tanh %113 : vector<8x128xf32>
    %cst_36 = arith.constant 1.000000e+00 : f32
    %115 = vector.broadcast %cst_36 : f32 to vector<8x128xf32>
    %116 = arith.subf %115, %108 : vector<8x128xf32>
    %117 = arith.mulf %116, %114 : vector<8x128xf32>
    %118 = arith.mulf %108, %85 : vector<8x128xf32>
    %119 = arith.addf %117, %118 : vector<8x128xf32>
    %120 = arith.index_cast %89 : i32 to index
    %c0_37 = arith.constant 0 : index
    %121 = vector.load %arg12[%120, %c0_37] : memref<64x128xf32, #tpu.memory_space<vmem>>, vector<8x128xf32>
    tpu.vector_store %arg12[%120, %c0_37], %119 {strides = array<i32>} : memref<64x128xf32, #tpu.memory_space<vmem>>, vector<8x128xf32>,
    %c3_i32 = arith.constant 3 : i32
    %c8_i32_38 = arith.constant 8 : i32
    %122 = arith.muli %c3_i32, %c8_i32_38 : i32
    %123 = tpu.assume_multiple %122, 8 : i32
    %124 = arith.index_cast %123 : i32 to index
    %c0_39 = arith.constant 0 : index
    %125 = vector.load %arg11[%124, %c0_39] : memref<64x384xf32, #tpu.memory_space<vmem>>, vector<8x384xf32>
    %cst_40 = arith.constant dense<0.000000e+00> : vector<8x384xf32>
    %126 = tpu.matmul %119, %15, %cst_40 {dimension_numbers = #tpu.dot_dimension_numbers<[1], [0], [0], [1], [0, 0, 1, 1], [], []>} : vector<8x128xf32>, vector<128x384xf32>, vector<8x384xf32> -> vector<8x384xf32>
    %127 = vector.extract_strided_slice %125 {offsets = [0, 0], sizes = [8, 128], strides = [1, 1]} : vector<8x384xf32> to vector<8x128xf32>
    %128 = vector.extract_strided_slice %126 {offsets = [0, 0], sizes = [8, 128], strides = [1, 1]} : vector<8x384xf32> to vector<8x128xf32>
    %129 = arith.addf %127, %128 : vector<8x128xf32>
    %130 = arith.negf %129 : vector<8x128xf32>
    %131 = math.exp %130 : vector<8x128xf32>
    %cst_41 = arith.constant 1.000000e+00 : f32
    %132 = vector.broadcast %cst_41 : f32 to vector<8x128xf32>
    %133 = arith.addf %132, %131 : vector<8x128xf32>
    %134 = arith.divf %132, %133 : vector<8x128xf32>
    %135 = vector.extract_strided_slice %125 {offsets = [0, 128], sizes = [8, 128], strides = [1, 1]} : vector<8x384xf32> to vector<8x128xf32>
    %136 = vector.extract_strided_slice %126 {offsets = [0, 128], sizes = [8, 128], strides = [1, 1]} : vector<8x384xf32> to vector<8x128xf32>
    %137 = arith.addf %135, %136 : vector<8x128xf32>
    %138 = arith.negf %137 : vector<8x128xf32>
    %139 = math.exp %138 : vector<8x128xf32>
    %cst_42 = arith.constant 1.000000e+00 : f32
    %140 = vector.broadcast %cst_42 : f32 to vector<8x128xf32>
    %141 = arith.addf %140, %139 : vector<8x128xf32>
    %142 = arith.divf %140, %141 : vector<8x128xf32>
    %143 = vector.extract_strided_slice %125 {offsets = [0, 256], sizes = [8, 128], strides = [1, 1]} : vector<8x384xf32> to vector<8x128xf32>
    %144 = vector.extract_strided_slice %126 {offsets = [0, 256], sizes = [8, 128], strides = [1, 1]} : vector<8x384xf32> to vector<8x128xf32>
    %145 = arith.addf %144, %18 : vector<8x128xf32>
    %146 = arith.mulf %134, %145 : vector<8x128xf32>
    %147 = arith.addf %143, %146 : vector<8x128xf32>
    %148 = math.tanh %147 : vector<8x128xf32>
    %cst_43 = arith.constant 1.000000e+00 : f32
    %149 = vector.broadcast %cst_43 : f32 to vector<8x128xf32>
    %150 = arith.subf %149, %142 : vector<8x128xf32>
    %151 = arith.mulf %150, %148 : vector<8x128xf32>
    %152 = arith.mulf %142, %119 : vector<8x128xf32>
    %153 = arith.addf %151, %152 : vector<8x128xf32>
    %154 = arith.index_cast %123 : i32 to index
    %c0_44 = arith.constant 0 : index
    %155 = vector.load %arg12[%154, %c0_44] : memref<64x128xf32, #tpu.memory_space<vmem>>, vector<8x128xf32>
    tpu.vector_store %arg12[%154, %c0_44], %153 {strides = array<i32>} : memref<64x128xf32, #tpu.memory_space<vmem>>, vector<8x128xf32>,
    %c4_i32 = arith.constant 4 : i32
    %c8_i32_45 = arith.constant 8 : i32
    %156 = arith.muli %c4_i32, %c8_i32_45 : i32
    %157 = tpu.assume_multiple %156, 8 : i32
    %158 = arith.index_cast %157 : i32 to index
    %c0_46 = arith.constant 0 : index
    %159 = vector.load %arg11[%158, %c0_46] : memref<64x384xf32, #tpu.memory_space<vmem>>, vector<8x384xf32>
    %cst_47 = arith.constant dense<0.000000e+00> : vector<8x384xf32>
    %160 = tpu.matmul %153, %15, %cst_47 {dimension_numbers = #tpu.dot_dimension_numbers<[1], [0], [0], [1], [0, 0, 1, 1], [], []>} : vector<8x128xf32>, vector<128x384xf32>, vector<8x384xf32> -> vector<8x384xf32>
    %161 = vector.extract_strided_slice %159 {offsets = [0, 0], sizes = [8, 128], strides = [1, 1]} : vector<8x384xf32> to vector<8x128xf32>
    %162 = vector.extract_strided_slice %160 {offsets = [0, 0], sizes = [8, 128], strides = [1, 1]} : vector<8x384xf32> to vector<8x128xf32>
    %163 = arith.addf %161, %162 : vector<8x128xf32>
    %164 = arith.negf %163 : vector<8x128xf32>
    %165 = math.exp %164 : vector<8x128xf32>
    %cst_48 = arith.constant 1.000000e+00 : f32
    %166 = vector.broadcast %cst_48 : f32 to vector<8x128xf32>
    %167 = arith.addf %166, %165 : vector<8x128xf32>
    %168 = arith.divf %166, %167 : vector<8x128xf32>
    %169 = vector.extract_strided_slice %159 {offsets = [0, 128], sizes = [8, 128], strides = [1, 1]} : vector<8x384xf32> to vector<8x128xf32>
    %170 = vector.extract_strided_slice %160 {offsets = [0, 128], sizes = [8, 128], strides = [1, 1]} : vector<8x384xf32> to vector<8x128xf32>
    %171 = arith.addf %169, %170 : vector<8x128xf32>
    %172 = arith.negf %171 : vector<8x128xf32>
    %173 = math.exp %172 : vector<8x128xf32>
    %cst_49 = arith.constant 1.000000e+00 : f32
    %174 = vector.broadcast %cst_49 : f32 to vector<8x128xf32>
    %175 = arith.addf %174, %173 : vector<8x128xf32>
    %176 = arith.divf %174, %175 : vector<8x128xf32>
    %177 = vector.extract_strided_slice %159 {offsets = [0, 256], sizes = [8, 128], strides = [1, 1]} : vector<8x384xf32> to vector<8x128xf32>
    %178 = vector.extract_strided_slice %160 {offsets = [0, 256], sizes = [8, 128], strides = [1, 1]} : vector<8x384xf32> to vector<8x128xf32>
    %179 = arith.addf %178, %18 : vector<8x128xf32>
    %180 = arith.mulf %168, %179 : vector<8x128xf32>
    %181 = arith.addf %177, %180 : vector<8x128xf32>
    %182 = math.tanh %181 : vector<8x128xf32>
    %cst_50 = arith.constant 1.000000e+00 : f32
    %183 = vector.broadcast %cst_50 : f32 to vector<8x128xf32>
    %184 = arith.subf %183, %176 : vector<8x128xf32>
    %185 = arith.mulf %184, %182 : vector<8x128xf32>
    %186 = arith.mulf %176, %153 : vector<8x128xf32>
    %187 = arith.addf %185, %186 : vector<8x128xf32>
    %188 = arith.index_cast %157 : i32 to index
    %c0_51 = arith.constant 0 : index
    %189 = vector.load %arg12[%188, %c0_51] : memref<64x128xf32, #tpu.memory_space<vmem>>, vector<8x128xf32>
    tpu.vector_store %arg12[%188, %c0_51], %187 {strides = array<i32>} : memref<64x128xf32, #tpu.memory_space<vmem>>, vector<8x128xf32>,
    %c5_i32 = arith.constant 5 : i32
    %c8_i32_52 = arith.constant 8 : i32
    %190 = arith.muli %c5_i32, %c8_i32_52 : i32
    %191 = tpu.assume_multiple %190, 8 : i32
    %192 = arith.index_cast %191 : i32 to index
    %c0_53 = arith.constant 0 : index
    %193 = vector.load %arg11[%192, %c0_53] : memref<64x384xf32, #tpu.memory_space<vmem>>, vector<8x384xf32>
    %cst_54 = arith.constant dense<0.000000e+00> : vector<8x384xf32>
    %194 = tpu.matmul %187, %15, %cst_54 {dimension_numbers = #tpu.dot_dimension_numbers<[1], [0], [0], [1], [0, 0, 1, 1], [], []>} : vector<8x128xf32>, vector<128x384xf32>, vector<8x384xf32> -> vector<8x384xf32>
    %195 = vector.extract_strided_slice %193 {offsets = [0, 0], sizes = [8, 128], strides = [1, 1]} : vector<8x384xf32> to vector<8x128xf32>
    %196 = vector.extract_strided_slice %194 {offsets = [0, 0], sizes = [8, 128], strides = [1, 1]} : vector<8x384xf32> to vector<8x128xf32>
    %197 = arith.addf %195, %196 : vector<8x128xf32>
    %198 = arith.negf %197 : vector<8x128xf32>
    %199 = math.exp %198 : vector<8x128xf32>
    %cst_55 = arith.constant 1.000000e+00 : f32
    %200 = vector.broadcast %cst_55 : f32 to vector<8x128xf32>
    %201 = arith.addf %200, %199 : vector<8x128xf32>
    %202 = arith.divf %200, %201 : vector<8x128xf32>
    %203 = vector.extract_strided_slice %193 {offsets = [0, 128], sizes = [8, 128], strides = [1, 1]} : vector<8x384xf32> to vector<8x128xf32>
    %204 = vector.extract_strided_slice %194 {offsets = [0, 128], sizes = [8, 128], strides = [1, 1]} : vector<8x384xf32> to vector<8x128xf32>
    %205 = arith.addf %203, %204 : vector<8x128xf32>
    %206 = arith.negf %205 : vector<8x128xf32>
    %207 = math.exp %206 : vector<8x128xf32>
    %cst_56 = arith.constant 1.000000e+00 : f32
    %208 = vector.broadcast %cst_56 : f32 to vector<8x128xf32>
    %209 = arith.addf %208, %207 : vector<8x128xf32>
    %210 = arith.divf %208, %209 : vector<8x128xf32>
    %211 = vector.extract_strided_slice %193 {offsets = [0, 256], sizes = [8, 128], strides = [1, 1]} : vector<8x384xf32> to vector<8x128xf32>
    %212 = vector.extract_strided_slice %194 {offsets = [0, 256], sizes = [8, 128], strides = [1, 1]} : vector<8x384xf32> to vector<8x128xf32>
    %213 = arith.addf %212, %18 : vector<8x128xf32>
    %214 = arith.mulf %202, %213 : vector<8x128xf32>
    %215 = arith.addf %211, %214 : vector<8x128xf32>
    %216 = math.tanh %215 : vector<8x128xf32>
    %cst_57 = arith.constant 1.000000e+00 : f32
    %217 = vector.broadcast %cst_57 : f32 to vector<8x128xf32>
    %218 = arith.subf %217, %210 : vector<8x128xf32>
    %219 = arith.mulf %218, %216 : vector<8x128xf32>
    %220 = arith.mulf %210, %187 : vector<8x128xf32>
    %221 = arith.addf %219, %220 : vector<8x128xf32>
    %222 = arith.index_cast %191 : i32 to index
    %c0_58 = arith.constant 0 : index
    %223 = vector.load %arg12[%222, %c0_58] : memref<64x128xf32, #tpu.memory_space<vmem>>, vector<8x128xf32>
    tpu.vector_store %arg12[%222, %c0_58], %221 {strides = array<i32>} : memref<64x128xf32, #tpu.memory_space<vmem>>, vector<8x128xf32>,
    %c6_i32 = arith.constant 6 : i32
    %c8_i32_59 = arith.constant 8 : i32
    %224 = arith.muli %c6_i32, %c8_i32_59 : i32
    %225 = tpu.assume_multiple %224, 8 : i32
    %226 = arith.index_cast %225 : i32 to index
    %c0_60 = arith.constant 0 : index
    %227 = vector.load %arg11[%226, %c0_60] : memref<64x384xf32, #tpu.memory_space<vmem>>, vector<8x384xf32>
    %cst_61 = arith.constant dense<0.000000e+00> : vector<8x384xf32>
    %228 = tpu.matmul %221, %15, %cst_61 {dimension_numbers = #tpu.dot_dimension_numbers<[1], [0], [0], [1], [0, 0, 1, 1], [], []>} : vector<8x128xf32>, vector<128x384xf32>, vector<8x384xf32> -> vector<8x384xf32>
    %229 = vector.extract_strided_slice %227 {offsets = [0, 0], sizes = [8, 128], strides = [1, 1]} : vector<8x384xf32> to vector<8x128xf32>
    %230 = vector.extract_strided_slice %228 {offsets = [0, 0], sizes = [8, 128], strides = [1, 1]} : vector<8x384xf32> to vector<8x128xf32>
    %231 = arith.addf %229, %230 : vector<8x128xf32>
    %232 = arith.negf %231 : vector<8x128xf32>
    %233 = math.exp %232 : vector<8x128xf32>
    %cst_62 = arith.constant 1.000000e+00 : f32
    %234 = vector.broadcast %cst_62 : f32 to vector<8x128xf32>
    %235 = arith.addf %234, %233 : vector<8x128xf32>
    %236 = arith.divf %234, %235 : vector<8x128xf32>
    %237 = vector.extract_strided_slice %227 {offsets = [0, 128], sizes = [8, 128], strides = [1, 1]} : vector<8x384xf32> to vector<8x128xf32>
    %238 = vector.extract_strided_slice %228 {offsets = [0, 128], sizes = [8, 128], strides = [1, 1]} : vector<8x384xf32> to vector<8x128xf32>
    %239 = arith.addf %237, %238 : vector<8x128xf32>
    %240 = arith.negf %239 : vector<8x128xf32>
    %241 = math.exp %240 : vector<8x128xf32>
    %cst_63 = arith.constant 1.000000e+00 : f32
    %242 = vector.broadcast %cst_63 : f32 to vector<8x128xf32>
    %243 = arith.addf %242, %241 : vector<8x128xf32>
    %244 = arith.divf %242, %243 : vector<8x128xf32>
    %245 = vector.extract_strided_slice %227 {offsets = [0, 256], sizes = [8, 128], strides = [1, 1]} : vector<8x384xf32> to vector<8x128xf32>
    %246 = vector.extract_strided_slice %228 {offsets = [0, 256], sizes = [8, 128], strides = [1, 1]} : vector<8x384xf32> to vector<8x128xf32>
    %247 = arith.addf %246, %18 : vector<8x128xf32>
    %248 = arith.mulf %236, %247 : vector<8x128xf32>
    %249 = arith.addf %245, %248 : vector<8x128xf32>
    %250 = math.tanh %249 : vector<8x128xf32>
    %cst_64 = arith.constant 1.000000e+00 : f32
    %251 = vector.broadcast %cst_64 : f32 to vector<8x128xf32>
    %252 = arith.subf %251, %244 : vector<8x128xf32>
    %253 = arith.mulf %252, %250 : vector<8x128xf32>
    %254 = arith.mulf %244, %221 : vector<8x128xf32>
    %255 = arith.addf %253, %254 : vector<8x128xf32>
    %256 = arith.index_cast %225 : i32 to index
    %c0_65 = arith.constant 0 : index
    %257 = vector.load %arg12[%256, %c0_65] : memref<64x128xf32, #tpu.memory_space<vmem>>, vector<8x128xf32>
    tpu.vector_store %arg12[%256, %c0_65], %255 {strides = array<i32>} : memref<64x128xf32, #tpu.memory_space<vmem>>, vector<8x128xf32>,
    %c7_i32 = arith.constant 7 : i32
    %c8_i32_66 = arith.constant 8 : i32
    %258 = arith.muli %c7_i32, %c8_i32_66 : i32
    %259 = tpu.assume_multiple %258, 8 : i32
    %260 = arith.index_cast %259 : i32 to index
    %c0_67 = arith.constant 0 : index
    %261 = vector.load %arg11[%260, %c0_67] : memref<64x384xf32, #tpu.memory_space<vmem>>, vector<8x384xf32>
    %cst_68 = arith.constant dense<0.000000e+00> : vector<8x384xf32>
    %262 = tpu.matmul %255, %15, %cst_68 {dimension_numbers = #tpu.dot_dimension_numbers<[1], [0], [0], [1], [0, 0, 1, 1], [], []>} : vector<8x128xf32>, vector<128x384xf32>, vector<8x384xf32> -> vector<8x384xf32>
    %263 = vector.extract_strided_slice %261 {offsets = [0, 0], sizes = [8, 128], strides = [1, 1]} : vector<8x384xf32> to vector<8x128xf32>
    %264 = vector.extract_strided_slice %262 {offsets = [0, 0], sizes = [8, 128], strides = [1, 1]} : vector<8x384xf32> to vector<8x128xf32>
    %265 = arith.addf %263, %264 : vector<8x128xf32>
    %266 = arith.negf %265 : vector<8x128xf32>
    %267 = math.exp %266 : vector<8x128xf32>
    %cst_69 = arith.constant 1.000000e+00 : f32
    %268 = vector.broadcast %cst_69 : f32 to vector<8x128xf32>
    %269 = arith.addf %268, %267 : vector<8x128xf32>
    %270 = arith.divf %268, %269 : vector<8x128xf32>
    %271 = vector.extract_strided_slice %261 {offsets = [0, 128], sizes = [8, 128], strides = [1, 1]} : vector<8x384xf32> to vector<8x128xf32>
    %272 = vector.extract_strided_slice %262 {offsets = [0, 128], sizes = [8, 128], strides = [1, 1]} : vector<8x384xf32> to vector<8x128xf32>
    %273 = arith.addf %271, %272 : vector<8x128xf32>
    %274 = arith.negf %273 : vector<8x128xf32>
    %275 = math.exp %274 : vector<8x128xf32>
    %cst_70 = arith.constant 1.000000e+00 : f32
    %276 = vector.broadcast %cst_70 : f32 to vector<8x128xf32>
    %277 = arith.addf %276, %275 : vector<8x128xf32>
    %278 = arith.divf %276, %277 : vector<8x128xf32>
    %279 = vector.extract_strided_slice %261 {offsets = [0, 256], sizes = [8, 128], strides = [1, 1]} : vector<8x384xf32> to vector<8x128xf32>
    %280 = vector.extract_strided_slice %262 {offsets = [0, 256], sizes = [8, 128], strides = [1, 1]} : vector<8x384xf32> to vector<8x128xf32>
    %281 = arith.addf %280, %18 : vector<8x128xf32>
    %282 = arith.mulf %270, %281 : vector<8x128xf32>
    %283 = arith.addf %279, %282 : vector<8x128xf32>
    %284 = math.tanh %283 : vector<8x128xf32>
    %cst_71 = arith.constant 1.000000e+00 : f32
    %285 = vector.broadcast %cst_71 : f32 to vector<8x128xf32>
    %286 = arith.subf %285, %278 : vector<8x128xf32>
    %287 = arith.mulf %286, %284 : vector<8x128xf32>
    %288 = arith.mulf %278, %255 : vector<8x128xf32>
    %289 = arith.addf %287, %288 : vector<8x128xf32>
    %290 = arith.index_cast %259 : i32 to index
    %c0_72 = arith.constant 0 : index
    %291 = vector.load %arg12[%290, %c0_72] : memref<64x128xf32, #tpu.memory_space<vmem>>, vector<8x128xf32>
    tpu.vector_store %arg12[%290, %c0_72], %289 {strides = array<i32>} : memref<64x128xf32, #tpu.memory_space<vmem>>, vector<8x128xf32>,
    %c8_i32_73 = arith.constant 8 : i32
    %c0_74 = arith.constant 0 : index
    %c0_75 = arith.constant 0 : index
    %292 = vector.load %arg12[%c0_74, %c0_75] : memref<64x128xf32, #tpu.memory_space<vmem>>, vector<64x128xf32>
    %293 = arith.truncf %292 : vector<64x128xf32> to vector<64x128xbf16>
    %c0_76 = arith.constant 0 : index
    %c0_77 = arith.constant 0 : index
    %294 = vector.load %arg8[%c0_76, %c0_77] : memref<128x128xbf16, #tpu.memory_space<vmem>>, vector<128x128xbf16>
    %cst_78 = arith.constant dense<0.000000e+00> : vector<64x128xf32>
    %295 = tpu.matmul %293, %294, %cst_78 {dimension_numbers = #tpu.dot_dimension_numbers<[1], [0], [0], [1], [0, 0, 1, 1], [], []>} : vector<64x128xbf16>, vector<128x128xbf16>, vector<64x128xf32> -> vector<64x128xf32>
    %c0_79 = arith.constant 0 : index
    %c0_80 = arith.constant 0 : index
    %296 = vector.load %arg9[%c0_79, %c0_80] : memref<1x128xf32, #tpu.memory_space<vmem>>, vector<1x128xf32>
    %297 = vector.broadcast %296 : vector<1x128xf32> to vector<64x128xf32>
    %298 = arith.addf %295, %297 : vector<64x128xf32>
    %c0_81 = arith.constant 0 : index
    %c0_82 = arith.constant 0 : index
    %299 = vector.load %arg10[%c0_81, %c0_82] : memref<64x128xf32, #tpu.memory_space<vmem>>, vector<64x128xf32>
    tpu.vector_store %arg10[%c0_81, %c0_82], %298 {strides = array<i32>} : memref<64x128xf32, #tpu.memory_space<vmem>>, vector<64x128xf32>,
    return
  }
  func.func @transform_0(%arg0: i32) -> (i32, i32) {
    %c0_i32 = arith.constant 0 : i32
    %c0_i32_0 = arith.constant 0 : i32
    return %arg0, %c0_i32 : i32, i32
  }
  func.func @transform_1(%arg0: i32) -> (i32, i32) {
    %c0_i32 = arith.constant 0 : i32
    %c0_i32_0 = arith.constant 0 : i32
    %c0_i32_1 = arith.constant 0 : i32
    return %c0_i32, %c0_i32_0 : i32, i32
  }
  func.func @transform_2(%arg0: i32) -> (i32, i32) {
    %c0_i32 = arith.constant 0 : i32
    %c0_i32_0 = arith.constant 0 : i32
    %c0_i32_1 = arith.constant 0 : i32
    return %c0_i32, %c0_i32_0 : i32, i32
  }
  func.func @transform_3(%arg0: i32) -> (i32, i32) {
    %c0_i32 = arith.constant 0 : i32
    %c0_i32_0 = arith.constant 0 : i32
    %c0_i32_1 = arith.constant 0 : i32
    return %c0_i32, %c0_i32_0 : i32, i32
  }
  func.func @transform_4(%arg0: i32) -> (i32, i32) {
    %c0_i32 = arith.constant 0 : i32
    %c0_i32_0 = arith.constant 0 : i32
    %c0_i32_1 = arith.constant 0 : i32
    return %c0_i32, %c0_i32_0 : i32, i32
  }
  func.func @transform_5(%arg0: i32) -> (i32, i32) {
    %c0_i32 = arith.constant 0 : i32
    %c0_i32_0 = arith.constant 0 : i32
    %c0_i32_1 = arith.constant 0 : i32
    return %c0_i32, %c0_i32_0 : i32, i32
  }
  func.func @transform_6(%arg0: i32) -> (i32, i32) {
    %c0_i32 = arith.constant 0 : i32
    %c0_i32_0 = arith.constant 0 : i32
    %c0_i32_1 = arith.constant 0 : i32
    return %c0_i32, %c0_i32_0 : i32, i32
  }
  func.func @transform_7(%arg0: i32) -> (i32, i32) {
    %c0_i32 = arith.constant 0 : i32
    %c0_i32_0 = arith.constant 0 : i32
    %c0_i32_1 = arith.constant 0 : i32
    return %c0_i32, %c0_i32_0 : i32, i32
  }
  func.func @transform_8(%arg0: i32) -> (i32, i32) {
    %c0_i32 = arith.constant 0 : i32
    %c0_i32_0 = arith.constant 0 : i32
    %c0_i32_1 = arith.constant 0 : i32
    return %c0_i32, %c0_i32_0 : i32, i32
  }
  func.func @transform_9(%arg0: i32) -> (i32, i32) {
    %c0_i32 = arith.constant 0 : i32
    %c0_i32_0 = arith.constant 0 : i32
    return %arg0, %c0_i32 : i32, i32
  }
}

</mosaic_0001>

<llo_original>
// kernel: encoder_forward.1
$region0: #{encoder_forward.1}
  #allocation0 [shape = 'u32[]', space=smem, size = 0x4, offset = 0x4, fixed_abs, tag = 'smem constant byte address 0x4 - core index']
  #allocation1 [shape = 'u32[144,128]{1,0:T(1,128)}', space=vmem, size = 0x12000, scoped, tag = 'internal scratch']
  #allocation2 [shape = 'f32[64,384]{1,0:T(8,128)}', space=vmem, size = 0x18000, scoped, tag = 'scratch operand']
  #allocation3 [shape = 'f32[64,128]{1,0:T(8,128)}', space=vmem, size = 0x8000, scoped, tag = 'scratch operand']
  %s0 = inlined_call_operand.vmem [shape: bf16[192,18], index: 0, kind: input, shape index: {}]
  %s1 = inlined_call_operand.vmem [shape: bf16[18,24], index: 1, kind: input, shape index: {}]
  %s2 = inlined_call_operand.vmem [shape: f32[1,24], index: 2, kind: input, shape index: {}]
  %s3 = inlined_call_operand.vmem [shape: bf16[24,384], index: 3, kind: input, shape index: {}]
  %s4 = inlined_call_operand.vmem [shape: f32[1,384], index: 4, kind: input, shape index: {}]
  %s5 = inlined_call_operand.vmem [shape: f32[128,384], index: 5, kind: input, shape index: {}]
  %s6 = inlined_call_operand.vmem [shape: f32[1,128], index: 6, kind: input, shape index: {}]
  %s7 = inlined_call_operand.vmem [shape: bf16[128,128], index: 7, kind: input, shape index: {}]
  %s8 = inlined_call_operand.vmem [shape: f32[1,128], index: 8, kind: input, shape index: {}]
  %s9 = inlined_call_operand.vmem [shape: f32[192,128], index: 9, kind: output, shape index: {}]
  %s10 = sld [smem:[#allocation0]]
  $region69: #{encoder_forward.1} parent=0
    _
  %s12 = ssub.s32 1, %s10
  %s13 = scalar_select 0, %s12, %s10
  loop: start=0, step=1, limit=5
  $region2: #{encoder_forward.1} parent=0 // loop_pre_header
    _
  $region3: #{encoder_forward.1} parent=0 // loop_header
    %s15 = sphi 0, %s19
    %p16 = scmp.ge.s32.totalorder %s15, 5
    %s25 = sphi 0, %s27
    %s28 = sphi 0, %s25
    %s29 = sphi 0, %s28
    %s45 = sphi 0, %s29
    %s49 = sphi 0, %s49
    %s51 = sphi 0, %s49
    %s52 = sphi 0, %s51
    %s66 = sphi 0, %s52
    %s70 = sphi 0, %s70
    %s72 = sphi 0, %s70
    %s73 = sphi 0, %s72
    %s87 = sphi 0, %s73
    %s91 = sphi 0, %s91
    %s93 = sphi 0, %s91
    %s94 = sphi 0, %s93
    %s108 = sphi 0, %s94
    %s112 = sphi 0, %s112
    %s114 = sphi 0, %s112
    %s115 = sphi 0, %s114
    %s129 = sphi 0, %s115
    %s133 = sphi 0, %s133
    %s135 = sphi 0, %s133
    %s136 = sphi 0, %s135
    %s150 = sphi 0, %s136
    %s154 = sphi 0, %s154
    %s156 = sphi 0, %s154
    %s157 = sphi 0, %s156
    %s171 = sphi 0, %s157
    %s175 = sphi 0, %s175
    %s177 = sphi 0, %s175
    %s178 = sphi 0, %s177
    %s192 = sphi 0, %s178
    %s196 = sphi 0, %s196
    %s198 = sphi 0, %s196
    %s199 = sphi 0, %s198
    %s213 = sphi 0, %s199
    %s219 = sphi 0, %s221
    %s222 = sphi 0, %s219
    %s223 = sphi 0, %s222
    %s239 = sphi 0, %s223
  $region4: #{encoder_forward.1} parent=0 // loop_header_branch
    %18 = sbr.rel (%p16) target = $region8
  $region5: #{encoder_forward.1} parent=0 // loop_body
    %s20 = ssub.s32 %s15, 1
    %s21 = ssub.s32 %s15, 2
    %s22 = sadd.s32 %s15, 1
    %s23 = ssub.s32 %s15, %s22
    %p24 = scmp.eq.s32.totalorder %s23, 0
    %s26 = sadd.s32 %s25, 1
    %s27 = scalar_select %p24, %s25, %s26
    %p30 = pneg %p24
    %p31 = scmp.eq.s32.totalorder %s15, 2
    %p32 = por %p30, %p31
    %p33 = scmp.ne.s32.totalorder %s25, %s28
    %p34 = scmp.eq.s32.totalorder %s15, 0
    %p35 = por %p33, %p34
    %p36 = scmp.ne.s32.totalorder %s25, %s28
    %p37 = scmp.eq.s32.totalorder %s20, 2
    %p38 = por %p36, %p37
    %p39 = scmp.ne.s32.totalorder %s28, %s29
    %p40 = scmp.eq.s32.totalorder %s20, 0
    %p41 = por %p39, %p40
    %p42 = scmp.ne.s32.totalorder %s28, %s29
    %p43 = scmp.eq.s32.totalorder %s21, 2
    %p44 = por %p42, %p43
    %p46 = scmp.ne.s32.totalorder %s29, %s45
    %p47 = scmp.eq.s32.totalorder %s21, 0
    %p48 = por %p46, %p47
    %s50 = sadd.s32 %s49, 1
    %p53 = scmp.eq.s32.totalorder %s15, 2
    %p54 = scmp.ne.s32.totalorder %s49, %s51
    %p55 = scmp.eq.s32.totalorder %s15, 0
    %p56 = por %p54, %p55
    %p57 = scmp.ne.s32.totalorder %s49, %s51
    %p58 = scmp.eq.s32.totalorder %s20, 2
    %p59 = por %p57, %p58
    %p60 = scmp.ne.s32.totalorder %s51, %s52
    %p61 = scmp.eq.s32.totalorder %s20, 0
    %p62 = por %p60, %p61
    %p63 = scmp.ne.s32.totalorder %s51, %s52
    %p64 = scmp.eq.s32.totalorder %s21, 2
    %p65 = por %p63, %p64
    %p67 = scmp.ne.s32.totalorder %s52, %s66
    %p68 = scmp.eq.s32.totalorder %s21, 0
    %p69 = por %p67, %p68
    %s71 = sadd.s32 %s70, 1
    %p74 = scmp.eq.s32.totalorder %s15, 2
    %p75 = scmp.ne.s32.totalorder %s70, %s72
    %p76 = scmp.eq.s32.totalorder %s15, 0
    %p77 = por %p75, %p76
    %p78 = scmp.ne.s32.totalorder %s70, %s72
    %p79 = scmp.eq.s32.totalorder %s20, 2
    %p80 = por %p78, %p79
    %p81 = scmp.ne.s32.totalorder %s72, %s73
    %p82 = scmp.eq.s32.totalorder %s20, 0
    %p83 = por %p81, %p82
    %p84 = scmp.ne.s32.totalorder %s72, %s73
    %p85 = scmp.eq.s32.totalorder %s21, 2
    %p86 = por %p84, %p85
    %p88 = scmp.ne.s32.totalorder %s73, %s87
    %p89 = scmp.eq.s32.totalorder %s21, 0
    %p90 = por %p88, %p89
    %s92 = sadd.s32 %s91, 1
    %p95 = scmp.eq.s32.totalorder %s15, 2
    %p96 = scmp.ne.s32.totalorder %s91, %s93
    %p97 = scmp.eq.s32.totalorder %s15, 0
    %p98 = por %p96, %p97
    %p99 = scmp.ne.s32.totalorder %s91, %s93
    %p100 = scmp.eq.s32.totalorder %s20, 2
    %p101 = por %p99, %p100
    %p102 = scmp.ne.s32.totalorder %s93, %s94
    %p103 = scmp.eq.s32.totalorder %s20, 0
    %p104 = por %p102, %p103
    %p105 = scmp.ne.s32.totalorder %s93, %s94
    %p106 = scmp.eq.s32.totalorder %s21, 2
    %p107 = por %p105, %p106
    %p109 = scmp.ne.s32.totalorder %s94, %s108
    %p110 = scmp.eq.s32.totalorder %s21, 0
    %p111 = por %p109, %p110
    %s113 = sadd.s32 %s112, 1
    %p116 = scmp.eq.s32.totalorder %s15, 2
    %p117 = scmp.ne.s32.totalorder %s112, %s114
    %p118 = scmp.eq.s32.totalorder %s15, 0
    %p119 = por %p117, %p118
    %p120 = scmp.ne.s32.totalorder %s112, %s114
    %p121 = scmp.eq.s32.totalorder %s20, 2
    %p122 = por %p120, %p121
    %p123 = scmp.ne.s32.totalorder %s114, %s115
    %p124 = scmp.eq.s32.totalorder %s20, 0
    %p125 = por %p123, %p124
    %p126 = scmp.ne.s32.totalorder %s114, %s115
    %p127 = scmp.eq.s32.totalorder %s21, 2
    %p128 = por %p126, %p127
    %p130 = scmp.ne.s32.totalorder %s115, %s129
    %p131 = scmp.eq.s32.totalorder %s21, 0
    %p132 = por %p130, %p131
    %s134 = sadd.s32 %s133, 1
    %p137 = scmp.eq.s32.totalorder %s15, 2
    %p138 = scmp.ne.s32.totalorder %s133, %s135
    %p139 = scmp.eq.s32.totalorder %s15, 0
    %p140 = por %p138, %p139
    %p141 = scmp.ne.s32.totalorder %s133, %s135
    %p142 = scmp.eq.s32.totalorder %s20, 2
    %p143 = por %p141, %p142
    %p144 = scmp.ne.s32.totalorder %s135, %s136
    %p145 = scmp.eq.s32.totalorder %s20, 0
    %p146 = por %p144, %p145
    %p147 = scmp.ne.s32.totalorder %s135, %s136
    %p148 = scmp.eq.s32.totalorder %s21, 2
    %p149 = por %p147, %p148
    %p151 = scmp.ne.s32.totalorder %s136, %s150
    %p152 = scmp.eq.s32.totalorder %s21, 0
    %p153 = por %p151, %p152
    %s155 = sadd.s32 %s154, 1
    %p158 = scmp.eq.s32.totalorder %s15, 2
    %p159 = scmp.ne.s32.totalorder %s154, %s156
    %p160 = scmp.eq.s32.totalorder %s15, 0
    %p161 = por %p159, %p160
    %p162 = scmp.ne.s32.totalorder %s154, %s156
    %p163 = scmp.eq.s32.totalorder %s20, 2
    %p164 = por %p162, %p163
    %p165 = scmp.ne.s32.totalorder %s156, %s157
    %p166 = scmp.eq.s32.totalorder %s20, 0
    %p167 = por %p165, %p166
    %p168 = scmp.ne.s32.totalorder %s156, %s157
    %p169 = scmp.eq.s32.totalorder %s21, 2
    %p170 = por %p168, %p169
    %p172 = scmp.ne.s32.totalorder %s157, %s171
    %p173 = scmp.eq.s32.totalorder %s21, 0
    %p174 = por %p172, %p173
    %s176 = sadd.s32 %s175, 1
    %p179 = scmp.eq.s32.totalorder %s15, 2
    %p180 = scmp.ne.s32.totalorder %s175, %s177
    %p181 = scmp.eq.s32.totalorder %s15, 0
    %p182 = por %p180, %p181
    %p183 = scmp.ne.s32.totalorder %s175, %s177
    %p184 = scmp.eq.s32.totalorder %s20, 2
    %p185 = por %p183, %p184
    %p186 = scmp.ne.s32.totalorder %s177, %s178
    %p187 = scmp.eq.s32.totalorder %s20, 0
    %p188 = por %p186, %p187
    %p189 = scmp.ne.s32.totalorder %s177, %s178
    %p190 = scmp.eq.s32.totalorder %s21, 2
    %p191 = por %p189, %p190
    %p193 = scmp.ne.s32.totalorder %s178, %s192
    %p194 = scmp.eq.s32.totalorder %s21, 0
    %p195 = por %p193, %p194
    %s197 = sadd.s32 %s196, 1
    %p200 = scmp.eq.s32.totalorder %s15, 2
    %p201 = scmp.ne.s32.totalorder %s196, %s198
    %p202 = scmp.eq.s32.totalorder %s15, 0
    %p203 = por %p201, %p202
    %p204 = scmp.ne.s32.totalorder %s196, %s198
    %p205 = scmp.eq.s32.totalorder %s20, 2
    %p206 = por %p204, %p205
    %p207 = scmp.ne.s32.totalorder %s198, %s199
    %p208 = scmp.eq.s32.totalorder %s20, 0
    %p209 = por %p207, %p208
    %p210 = scmp.ne.s32.totalorder %s198, %s199
    %p211 = scmp.eq.s32.totalorder %s21, 2
    %p212 = por %p210, %p211
    %p214 = scmp.ne.s32.totalorder %s199, %s213
    %p215 = scmp.eq.s32.totalorder %s21, 0
    %p216 = por %p214, %p215
    %s217 = ssub.s32 %s15, %s22
    %p218 = scmp.eq.s32.totalorder %s217, 0
    %s220 = sadd.s32 %s219, 1
    %s221 = scalar_select %p218, %s219, %s220
    %p224 = pneg %p218
    %p225 = scmp.eq.s32.totalorder %s15, 2
    %p226 = por %p224, %p225
    %p227 = scmp.ne.s32.totalorder %s219, %s222
    %p228 = scmp.eq.s32.totalorder %s15, 0
    %p229 = por %p227, %p228
    %p230 = scmp.ne.s32.totalorder %s219, %s222
    %p231 = scmp.eq.s32.totalorder %s20, 2
    %p232 = por %p230, %p231
    %p233 = scmp.ne.s32.totalorder %s222, %s223
    %p234 = scmp.eq.s32.totalorder %s20, 0
    %p235 = por %p233, %p234
    %p236 = scmp.ne.s32.totalorder %s222, %s223
    %p237 = scmp.eq.s32.totalorder %s21, 2
    %p238 = por %p236, %p237
    %p240 = scmp.ne.s32.totalorder %s223, %s239
    %p241 = scmp.eq.s32.totalorder %s21, 0
    %p242 = por %p240, %p241
    %p243 = scmp.le.s32.totalorder 1, %s15
    %p244 = scmp.lt.s32.totalorder %s15, 4
    %p245 = pnand %p243, %p244
    %p246 = pneg %p245
    // Predicated region
    $region9: #{encoder_forward.1} parent=5 // pred_check
      _
    $region10: #{encoder_forward.1} parent=5 // pred_check_branch
      %248 = sbr.rel (%p245) target = $region12
    $region11: #{encoder_forward.1} parent=5 // pred_region
      %s249 = ssub.s32 %s15, 1
      // Predicated region
      $region13: #{encoder_forward.1} parent=11 // pred_check
        %p250 = pneg %p62
      $region14: #{encoder_forward.1} parent=11 // pred_check_branch
        %252 = sbr.rel (%p250) target = $region16
      $region15: #{encoder_forward.1} parent=11 // pred_region
        _
      $region16: #{encoder_forward.1} parent=11 // pred_fallthru
        _
      // Predicated region
      $region17: #{encoder_forward.1} parent=11 // pred_check
        %p253 = pneg %p83
      $region18: #{encoder_forward.1} parent=11 // pred_check_branch
        %255 = sbr.rel (%p253) target = $region20
      $region19: #{encoder_forward.1} parent=11 // pred_region
        _
      $region20: #{encoder_forward.1} parent=11 // pred_fallthru
        _
      // Predicated region
      $region21: #{encoder_forward.1} parent=11 // pred_check
        %p256 = pneg %p104
      $region22: #{encoder_forward.1} parent=11 // pred_check_branch
        %258 = sbr.rel (%p256) target = $region24
      $region23: #{encoder_forward.1} parent=11 // pred_region
        _
      $region24: #{encoder_forward.1} parent=11 // pred_fallthru
        _
      // Predicated region
      $region25: #{encoder_forward.1} parent=11 // pred_check
        %p259 = pneg %p125
      $region26: #{encoder_forward.1} parent=11 // pred_check_branch
        %261 = sbr.rel (%p259) target = $region28
      $region27: #{encoder_forward.1} parent=11 // pred_region
        _
      $region28: #{encoder_forward.1} parent=11 // pred_fallthru
        _
      // Predicated region
      $region29: #{encoder_forward.1} parent=11 // pred_check
        %p262 = pneg %p146
      $region30: #{encoder_forward.1} parent=11 // pred_check_branch
        %264 = sbr.rel (%p262) target = $region32
      $region31: #{encoder_forward.1} parent=11 // pred_region
        _
      $region32: #{encoder_forward.1} parent=11 // pred_fallthru
        _
      // Predicated region
      $region33: #{encoder_forward.1} parent=11 // pred_check
        %p265 = pneg %p167
      $region34: #{encoder_forward.1} parent=11 // pred_check_branch
        %267 = sbr.rel (%p265) target = $region36
      $region35: #{encoder_forward.1} parent=11 // pred_region
        _
      $region36: #{encoder_forward.1} parent=11 // pred_fallthru
        _
      // Predicated region
      $region37: #{encoder_forward.1} parent=11 // pred_check
        %p268 = pneg %p188
      $region38: #{encoder_forward.1} parent=11 // pred_check_branch
        %270 = sbr.rel (%p268) target = $region40
      $region39: #{encoder_forward.1} parent=11 // pred_region
        _
      $region40: #{encoder_forward.1} parent=11 // pred_fallthru
        _
      // Predicated region
      $region41: #{encoder_forward.1} parent=11 // pred_check
        %p271 = pneg %p209
      $region42: #{encoder_forward.1} parent=11 // pred_check_branch
        %273 = sbr.rel (%p271) target = $region44
      $region43: #{encoder_forward.1} parent=11 // pred_region
        _
      $region44: #{encoder_forward.1} parent=11 // pred_fallthru
        _
    $region12: #{encoder_forward.1} parent=5 // pred_fallthru
      _
    %p274 = scmp.lt.s32.totalorder %s15, 3
    // Predicated region
    $region45: #{encoder_forward.1} parent=5 // pred_check
      %p275 = pneg %p274
    $region46: #{encoder_forward.1} parent=5 // pred_check_branch
      %277 = sbr.rel (%p275) target = $region48
    $region47: #{encoder_forward.1} parent=5 // pred_region
      // Predicated region
      $region49: #{encoder_forward.1} parent=47 // pred_check
        %p278 = pneg %p35
      $region50: #{encoder_forward.1} parent=47 // pred_check_branch
        %280 = sbr.rel (%p278) target = $region52
      $region51: #{encoder_forward.1} parent=47 // pred_region
        %s281 = smul.u32 8, %s15
        %p282 = scmp.lt.s32.totalorder %s281, 23
        %s283 = scalar_select %p282, %s281, 23
        %s284 = smul.addr %s283, 4
        %s285 = scalar_lea.vmem %s0, %s284
        %s286 = smul.u32 8, %s15
      $region52: #{encoder_forward.1} parent=47 // pred_fallthru
        _
    $region48: #{encoder_forward.1} parent=5 // pred_fallthru
      _
    %p287 = scmp.le.s32.totalorder 1, %s15
    %p288 = scmp.lt.s32.totalorder %s15, 4
    %p289 = pnand %p287, %p288
    %p290 = pneg %p289
    // Predicated region
    $region53: #{encoder_forward.1} parent=5 // pred_check
      _
    $region54: #{encoder_forward.1} parent=5 // pred_check_branch
      %292 = sbr.rel (%p289) target = $region56
    $region55: #{encoder_forward.1} parent=5 // pred_region
      %s293 = ssub.s32 %s15, 1
      %s294 = smul.u32 8, %s20
      %p295 = scmp.lt.s32.totalorder %s294, 23
      %s296 = scalar_select %p295, %s294, 23
      %s297 = smul.addr %s296, 4
      %s298 = scalar_lea.vmem %s0, %s297
      %p299 = pneg %p41
      %p300 = pneg %p38
      %p301 = pneg %p62
      %p302 = pneg %p59
      %p303 = pneg %p83
      %p304 = pneg %p80
      %p305 = pneg %p104
      %p306 = pneg %p101
      %p307 = pneg %p125
      %p308 = pneg %p122
      %p309 = pneg %p146
      %p310 = pneg %p143
      %p311 = pneg %p167
      %p312 = pneg %p164
      %p313 = pneg %p188
      %p314 = pneg %p185
      %p315 = pneg %p209
      %p316 = pneg %p206
      %p317 = pneg %p235
      %p318 = pneg %p232
      %s319 = smul.u32 8, %s20
      %p320 = scmp.lt.s32.totalorder %s319, 23
      %s321 = scalar_select %p320, %s319, 23
      %s322 = smul.addr %s321, 8
      %s323 = scalar_lea.vmem %s9, %s322
      %s324 = smul.u32 8, %s20
      %p325 = scmp.lt.s32.totalorder %s324, 23
      %s326 = scalar_select %p325, %s324, 23
      %s327 = smul.addr %s326, 4
      %s328 = scalar_lea.vmem %s0, %s327
      %s329 = smul.u32 8, %s20
      %s330 = smul.u32 8, %s20
      %p331 = scmp.lt.s32.totalorder %s330, 23
      %s332 = scalar_select %p331, %s330, 23
      %s333 = smul.addr %s332, 8
      %s334 = scalar_lea.vmem %s9, %s333
      %s335 = smul.u32 8, %s20
      %v337 = vld [vmem:[%s328] sm:$0xf]
      %v338 = vld [vmem:[%s328 + $0x4] sm:$0xf]
      %v339 = vld [vmem:[%s328 + $0x8] sm:$0xf]
      %v340 = vld [vmem:[%s328 + $0xc] sm:$0xf]
      %v341 = vld [vmem:[%s328 + $0x10] sm:$0xf]
      %v342 = vld [vmem:[%s328 + $0x14] sm:$0xf]
      %v343 = vld [vmem:[%s328 + $0x18] sm:$0xf]
      %v344 = vld [vmem:[%s328 + $0x1c] sm:$0xf]
      %v345 = vld [vmem:[%s1] sm:$0xf]
      %v346 = vld [vmem:[%s1 + $0x4] sm:$0xf]
      %v347 = vld [vmem:[%s1 + $0x8] sm:$0x1]
      %v348 = vld [vmem:[%s2] sm:$0x1]
      %v350 = vlaneseq
      %v351 = vshrl.u32 %v350, 7
      %v352 = vsub.s32 0, %v351
      %v353 = vrot.slane %v348, %v352
      %v363 = vunpack.c.l.b16 %v337
      %v364 = vunpack.c.l.b16 %v338
      %v365 = vunpack.c.l.b16 %v339
      %v366 = vunpack.c.l.b16 %v340
      %v367 = vunpack.c.l.b16 %v341
      %v368 = vunpack.c.l.b16 %v342
      %v369 = vunpack.c.l.b16 %v343
      %v370 = vunpack.c.l.b16 %v344
      %v371 = vpack.c.b16 %v364, %v363
      %v372 = vpack.c.b16 %v366, %v365
      %v373 = vpack.c.b16 %v368, %v367
      %v374 = vpack.c.b16 %v370, %v369
      %v378 = vunpack.c.l.b16 %v345
      %v379 = vunpack.c.l.b16 %v346
      %v380 = vunpack.c.l.b16 %v347
      %v381 = vpack.c.b16 %v379, %v378
      %v382 = vpack.c.b16 %v380, %v380
      %vm384 = vcmask 146432
      %v386 = vsel %vm384, %v371, 0
      %v389 = vsel %vm384, %v372, 0
      %v392 = vsel %vm384, %v373, 0
      %v395 = vsel %vm384, %v374, 0
      %vm397 = vcmask 1040384
      %v399 = vsel %vm397, %v382, 0
      %401 = vmatprep.subr.bf16.mxu0 0
      %402 = vmatpush1.bf16.msra.mxu0 0
      %403 = vmatprep.subr.bf16.mxu0 0
      %404 = vmatpush1.bf16.msra.mxu0 0
      %405 = vmatprep.subr.bf16.mxu0 0
      %406 = vmatpush1.bf16.msra.mxu0 0
      %407 = vmatprep.subr.bf16.mxu0 0
      %408 = vmatpush1.bf16.msra.mxu0 0
      %409 = vmatprep.subr.bf16.mxu0 0
      %410 = vmatpush1.bf16.msra.mxu0 0
      %411 = vmatprep.subr.bf16.mxu0 0
      %412 = vmatpush1.bf16.msra.mxu0 0
      %413 = vmatprep.subr.bf16.mxu0 0
      %414 = vmatpush1.bf16.msra.mxu0 %v399
      %415 = vmatprep.subr.bf16.mxu0 0
      %416 = vmatpush1.bf16.msra.mxu0 %v381
      %417 = vmatprep.subr.bf16.mxu0 0
      %418 = vmatpush2.bf16.msra.mxu0 0
      %419 = vmatprep.subr.bf16.mxu0 0
      %420 = vmatpush2.bf16.msra.mxu0 0
      %421 = vmatprep.subr.bf16.mxu0 0
      %422 = vmatpush2.bf16.msra.mxu0 0
      %423 = vmatprep.subr.bf16.mxu0 0
      %424 = vmatpush2.bf16.msra.mxu0 0
      %425 = vmatprep.subr.bf16.mxu0 0
      %426 = vmatpush2.bf16.msra.mxu0 0
      %427 = vmatprep.subr.bf16.mxu0 0
      %428 = vmatpush2.bf16.msra.mxu0 0
      %429 = vmatprep.subr.bf16.mxu0 0
      %430 = vmatpush2.bf16.msra.mxu0 0
      %431 = vmatprep.subr.bf16.mxu0 0
      %432 = vmatpush2.bf16.msra.mxu0 0
      %433 = vmatprep.mubr.bf16.mxu0 0
      %434 = vmatmul.mubr.bf16.gmra.mxu0 %v386
      %v435 = vpop.f32.mrf.mxu0
      %v436 = vadd.f32 %v353, %v435
      %v437 = vpop.f32.mrf.mxu0
      %v438 = vpop.f32.mrf.mxu0
      %v439 = vadd.f32 %v353, %v438
      %v440 = vpop.f32.mrf.mxu0
      %441 = vmatprep.mubr.bf16.mxu0 0
      %442 = vmatmul.mubr.bf16.gmra.mxu0 %v389
      %v443 = vpop.f32.mrf.mxu0
      %v444 = vadd.f32 %v353, %v443
      %v445 = vpop.f32.mrf.mxu0
      %v446 = vpop.f32.mrf.mxu0
      %v447 = vadd.f32 %v353, %v446
      %v448 = vpop.f32.mrf.mxu0
      %449 = vmatprep.mubr.bf16.mxu0 0
      %450 = vmatmul.mubr.bf16.gmra.mxu0 %v392
      %v451 = vpop.f32.mrf.mxu0
      %v452 = vadd.f32 %v353, %v451
      %v453 = vpop.f32.mrf.mxu0
      %v454 = vpop.f32.mrf.mxu0
      %v455 = vadd.f32 %v353, %v454
      %v456 = vpop.f32.mrf.mxu0
      %457 = vmatprep.mubr.bf16.mxu0 0
      %458 = vmatmul.mubr.bf16.gmra.mxu0 %v395
      %v459 = vpop.f32.mrf.mxu0
      %v460 = vadd.f32 %v353, %v459
      %v461 = vpop.f32.mrf.mxu0
      %v462 = vpop.f32.mrf.mxu0
      %v463 = vadd.f32 %v353, %v462
      %v464 = vpop.f32.mrf.mxu0
      %465 = vdwg.mxu0
      %v466 = vmax.f32 %v436, 0.0
      %v467 = vmax.f32 %v439, 0.0
      %v468 = vmax.f32 %v444, 0.0
      %v469 = vmax.f32 %v447, 0.0
      %v470 = vmax.f32 %v452, 0.0
      %v471 = vmax.f32 %v455, 0.0
      %v472 = vmax.f32 %v460, 0.0
      %v473 = vmax.f32 %v463, 0.0
      %v474 = vpack.c.bf16 %v467, %v466
      %v475 = vpack.c.bf16 %v469, %v468
      %v476 = vpack.c.bf16 %v471, %v470
      %v477 = vpack.c.bf16 %v473, %v472
      %v478 = vld [vmem:[%s3] sm:$0xff]
      %v479 = vld [vmem:[%s3 + $0x8] sm:$0xf]
      %v480 = vld [vmem:[%s3 + $0xc] sm:$0xff]
      %v481 = vld [vmem:[%s3 + $0x14] sm:$0xf]
      %v482 = vld [vmem:[%s3 + $0x18] sm:$0xff]
      %v483 = vld [vmem:[%s3 + $0x20] sm:$0xf]
      %v484 = vld [vmem:[%s4] sm:$0x7]
      %v486 = vlaneseq
      %v487 = vshrl.u32 %v486, 7
      %v488 = vsub.s32 0, %v487
      %v489 = vrot.slane %v484, %v488
      %v490 = vlaneseq
      %v491 = vshrl.u32 %v490, 7
      %v492 = vsub.s32 1, %v491
      %v493 = vrot.slane %v484, %v492
      %v494 = vlaneseq
      %v495 = vshrl.u32 %v494, 7
      %v496 = vsub.s32 2, %v495
      %v497 = vrot.slane %v484, %v496
      %v507 = vunpack.c.l.b16 %v478
      %v508 = vunpack.c.h.b16 %v478
      %v509 = vunpack.c.l.b16 %v479
      %v510 = vunpack.c.l.b16 %v480
      %v511 = vunpack.c.h.b16 %v480
      %v512 = vunpack.c.l.b16 %v481
      %v513 = vunpack.c.l.b16 %v482
      %v514 = vunpack.c.h.b16 %v482
      %v515 = vunpack.c.l.b16 %v483
      %v516 = vpack.c.b16 %v510, %v507
      %v517 = vpack.c.b16 %v511, %v508
      %v518 = vpack.c.b16 %v512, %v509
      %v519 = vpack.c.b16 %v513, %v513
      %v520 = vpack.c.b16 %v514, %v514
      %v521 = vpack.c.b16 %v515, %v515
      %vm525 = vcmask 195584
      %v527 = vsel %vm525, %v474, 0
      %v530 = vsel %vm525, %v475, 0
      %v533 = vsel %vm525, %v476, 0
      %v536 = vsel %vm525, %v477, 0
      %vm538 = vcmask 1043456
      %v540 = vsel %vm538, %v519, 0
      %v543 = vsel %vm538, %v520, 0
      %v546 = vsel %vm538, %v521, 0
      %548 = vmatprep.subr.bf16.mxu0 0
      %549 = vmatpush1.bf16.msra.mxu0 0
      %550 = vmatprep.subr.bf16.mxu0 0
      %551 = vmatpush1.bf16.msra.mxu0 0
      %552 = vmatprep.subr.bf16.mxu0 0
      %553 = vmatpush1.bf16.msra.mxu0 0
      %554 = vmatprep.subr.bf16.mxu0 0
      %555 = vmatpush1.bf16.msra.mxu0 0
      %556 = vmatprep.subr.bf16.mxu0 0
      %557 = vmatpush1.bf16.msra.mxu0 0
      %558 = vmatprep.subr.bf16.mxu0 0
      %559 = vmatpush1.bf16.msra.mxu0 0
      %560 = vmatprep.subr.bf16.mxu0 %v543
      %561 = vmatpush1.bf16.msra.mxu0 %v540
      %562 = vmatprep.subr.bf16.mxu0 %v517
      %563 = vmatpush1.bf16.msra.mxu0 %v516
      %564 = vmatprep.subr.bf16.mxu0 0
      %565 = vmatpush2.bf16.msra.mxu0 0
      %566 = vmatprep.subr.bf16.mxu0 0
      %567 = vmatpush2.bf16.msra.mxu0 0
      %568 = vmatprep.subr.bf16.mxu0 0
      %569 = vmatpush2.bf16.msra.mxu0 0
      %570 = vmatprep.subr.bf16.mxu0 0
      %571 = vmatpush2.bf16.msra.mxu0 0
      %572 = vmatprep.subr.bf16.mxu0 0
      %573 = vmatpush2.bf16.msra.mxu0 0
      %574 = vmatprep.subr.bf16.mxu0 0
      %575 = vmatpush2.bf16.msra.mxu0 0
      %576 = vmatprep.subr.bf16.mxu0 0
      %577 = vmatpush2.bf16.msra.mxu0 0
      %578 = vmatprep.subr.bf16.mxu0 0
      %579 = vmatpush2.bf16.msra.mxu0 0
      %580 = vmatprep.mubr.bf16.mxu0 0
      %581 = vmatmul.mubr.bf16.gmra.mxu0 %v527
      %v582 = vpop.f32.mrf.mxu0
      %v583 = vadd.f32 %v489, %v582
      %v584 = vpop.f32.mrf.mxu0
      %v585 = vadd.f32 %v493, %v584
      %v586 = vpop.f32.mrf.mxu0
      %v587 = vadd.f32 %v489, %v586
      %v588 = vpop.f32.mrf.mxu0
      %v589 = vadd.f32 %v493, %v588
      %590 = vmatprep.mubr.bf16.mxu0 0
      %591 = vmatmul.mubr.bf16.gmra.mxu0 %v530
      %v592 = vpop.f32.mrf.mxu0
      %v593 = vadd.f32 %v489, %v592
      %v594 = vpop.f32.mrf.mxu0
      %v595 = vadd.f32 %v493, %v594
      %v596 = vpop.f32.mrf.mxu0
      %v597 = vadd.f32 %v489, %v596
      %v598 = vpop.f32.mrf.mxu0
      %v599 = vadd.f32 %v493, %v598
      %600 = vmatprep.mubr.bf16.mxu0 0
      %601 = vmatmul.mubr.bf16.gmra.mxu0 %v533
      %v602 = vpop.f32.mrf.mxu0
      %v603 = vadd.f32 %v489, %v602
      %v604 = vpop.f32.mrf.mxu0
      %v605 = vadd.f32 %v493, %v604
      %v606 = vpop.f32.mrf.mxu0
      %v607 = vadd.f32 %v489, %v606
      %v608 = vpop.f32.mrf.mxu0
      %v609 = vadd.f32 %v493, %v608
      %610 = vmatprep.mubr.bf16.mxu0 0
      %611 = vmatmul.mubr.bf16.gmra.mxu0 %v536
      %v612 = vpop.f32.mrf.mxu0
      %v613 = vadd.f32 %v489, %v612
      %v614 = vpop.f32.mrf.mxu0
      %v615 = vadd.f32 %v493, %v614
      %v616 = vpop.f32.mrf.mxu0
      %v617 = vadd.f32 %v489, %v616
      %v618 = vpop.f32.mrf.mxu0
      %v619 = vadd.f32 %v493, %v618
      %620 = vdwg.mxu0
      %621 = vmatprep.subr.bf16.mxu0 0
      %622 = vmatpush1.bf16.msra.mxu0 0
      %623 = vmatprep.subr.bf16.mxu0 0
      %624 = vmatpush1.bf16.msra.mxu0 0
      %625 = vmatprep.subr.bf16.mxu0 0
      %626 = vmatpush1.bf16.msra.mxu0 0
      %627 = vmatprep.subr.bf16.mxu0 0
      %628 = vmatpush1.bf16.msra.mxu0 0
      %629 = vmatprep.subr.bf16.mxu0 0
      %630 = vmatpush1.bf16.msra.mxu0 0
      %631 = vmatprep.subr.bf16.mxu0 0
      %632 = vmatpush1.bf16.msra.mxu0 0
      %633 = vmatprep.subr.bf16.mxu0 0
      %634 = vmatpush1.bf16.msra.mxu0 %v546
      %635 = vmatprep.subr.bf16.mxu0 0
      %636 = vmatpush1.bf16.msra.mxu0 %v518
      %637 = vmatprep.subr.bf16.mxu0 0
      %638 = vmatpush2.bf16.msra.mxu0 0
      %639 = vmatprep.subr.bf16.mxu0 0
      %640 = vmatpush2.bf16.msra.mxu0 0
      %641 = vmatprep.subr.bf16.mxu0 0
      %642 = vmatpush2.bf16.msra.mxu0 0
      %643 = vmatprep.subr.bf16.mxu0 0
      %644 = vmatpush2.bf16.msra.mxu0 0
      %645 = vmatprep.subr.bf16.mxu0 0
      %646 = vmatpush2.bf16.msra.mxu0 0
      %647 = vmatprep.subr.bf16.mxu0 0
      %648 = vmatpush2.bf16.msra.mxu0 0
      %649 = vmatprep.subr.bf16.mxu0 0
      %650 = vmatpush2.bf16.msra.mxu0 0
      %651 = vmatprep.subr.bf16.mxu0 0
      %652 = vmatpush2.bf16.msra.mxu0 0
      %653 = vmatprep.mubr.bf16.mxu0 0
      %654 = vmatmul.mubr.bf16.gmra.mxu0 %v527
      %v655 = vpop.f32.mrf.mxu0
      %v656 = vadd.f32 %v497, %v655
      %v657 = vpop.f32.mrf.mxu0
      %v658 = vpop.f32.mrf.mxu0
      %v659 = vadd.f32 %v497, %v658
      %v660 = vpop.f32.mrf.mxu0
      %661 = vmatprep.mubr.bf16.mxu0 0
      %662 = vmatmul.mubr.bf16.gmra.mxu0 %v530
      %v663 = vpop.f32.mrf.mxu0
      %v664 = vadd.f32 %v497, %v663
      %v665 = vpop.f32.mrf.mxu0
      %v666 = vpop.f32.mrf.mxu0
      %v667 = vadd.f32 %v497, %v666
      %v668 = vpop.f32.mrf.mxu0
      %669 = vmatprep.mubr.bf16.mxu0 0
      %670 = vmatmul.mubr.bf16.gmra.mxu0 %v533
      %v671 = vpop.f32.mrf.mxu0
      %v672 = vadd.f32 %v497, %v671
      %v673 = vpop.f32.mrf.mxu0
      %v674 = vpop.f32.mrf.mxu0
      %v675 = vadd.f32 %v497, %v674
      %v676 = vpop.f32.mrf.mxu0
      %677 = vmatprep.mubr.bf16.mxu0 0
      %678 = vmatmul.mubr.bf16.gmra.mxu0 %v536
      %v679 = vpop.f32.mrf.mxu0
      %v680 = vadd.f32 %v497, %v679
      %v681 = vpop.f32.mrf.mxu0
      %v682 = vpop.f32.mrf.mxu0
      %v683 = vadd.f32 %v497, %v682
      %v684 = vpop.f32.mrf.mxu0
      %685 = vdwg.mxu0
      %686 = vst [vmem:[#allocation2] sm:$0xff] %v583
      %687 = vst [vmem:[#allocation2 + $0x8] sm:$0xff] %v585
      %688 = vst [vmem:[#allocation2 + $0x10] sm:$0xff] %v656
      %689 = vst [vmem:[#allocation2 + $0x18] sm:$0xff] %v587
      %690 = vst [vmem:[#allocation2 + $0x20] sm:$0xff] %v589
      %691 = vst [vmem:[#allocation2 + $0x28] sm:$0xff] %v659
      %692 = vst [vmem:[#allocation2 + $0x30] sm:$0xff] %v593
      %693 = vst [vmem:[#allocation2 + $0x38] sm:$0xff] %v595
      %694 = vst [vmem:[#allocation2 + $0x40] sm:$0xff] %v664
      %695 = vst [vmem:[#allocation2 + $0x48] sm:$0xff] %v597
      %696 = vst [vmem:[#allocation2 + $0x50] sm:$0xff] %v599
      %697 = vst [vmem:[#allocation2 + $0x58] sm:$0xff] %v667
      %698 = vst [vmem:[#allocation2 + $0x60] sm:$0xff] %v603
      %699 = vst [vmem:[#allocation2 + $0x68] sm:$0xff] %v605
      %700 = vst [vmem:[#allocation2 + $0x70] sm:$0xff] %v672
      %701 = vst [vmem:[#allocation2 + $0x78] sm:$0xff] %v607
      %702 = vst [vmem:[#allocation2 + $0x80] sm:$0xff] %v609
      %703 = vst [vmem:[#allocation2 + $0x88] sm:$0xff] %v675
      %704 = vst [vmem:[#allocation2 + $0x90] sm:$0xff] %v613
      %705 = vst [vmem:[#allocation2 + $0x98] sm:$0xff] %v615
      %706 = vst [vmem:[#allocation2 + $0xa0] sm:$0xff] %v680
      %707 = vst [vmem:[#allocation2 + $0xa8] sm:$0xff] %v617
      %708 = vst [vmem:[#allocation2 + $0xb0] sm:$0xff] %v619
      %709 = vst [vmem:[#allocation2 + $0xb8] sm:$0xff] %v683
      %v710 = vld [vmem:[%s5] sm:$0xff]
      %v711 = vld [vmem:[%s5 + $0x8] sm:$0xff]
      %v712 = vld [vmem:[%s5 + $0x10] sm:$0xff]
      %v713 = vld [vmem:[%s5 + $0x18] sm:$0xff]
      %v714 = vld [vmem:[%s5 + $0x20] sm:$0xff]
      %v715 = vld [vmem:[%s5 + $0x28] sm:$0xff]
      %v716 = vld [vmem:[%s5 + $0x30] sm:$0xff]
      %v717 = vld [vmem:[%s5 + $0x38] sm:$0xff]
      %v718 = vld [vmem:[%s5 + $0x40] sm:$0xff]
      %v719 = vld [vmem:[%s5 + $0x48] sm:$0xff]
      %v720 = vld [vmem:[%s5 + $0x50] sm:$0xff]
      %v721 = vld [vmem:[%s5 + $0x58] sm:$0xff]
      %v722 = vld [vmem:[%s5 + $0x60] sm:$0xff]
      %v723 = vld [vmem:[%s5 + $0x68] sm:$0xff]
      %v724 = vld [vmem:[%s5 + $0x70] sm:$0xff]
      %v725 = vld [vmem:[%s5 + $0x78] sm:$0xff]
      %v726 = vld [vmem:[%s5 + $0x80] sm:$0xff]
      %v727 = vld [vmem:[%s5 + $0x88] sm:$0xff]
      %v728 = vld [vmem:[%s5 + $0x90] sm:$0xff]
      %v729 = vld [vmem:[%s5 + $0x98] sm:$0xff]
      %v730 = vld [vmem:[%s5 + $0xa0] sm:$0xff]
      %v731 = vld [vmem:[%s5 + $0xa8] sm:$0xff]
      %v732 = vld [vmem:[%s5 + $0xb0] sm:$0xff]
      %v733 = vld [vmem:[%s5 + $0xb8] sm:$0xff]
      %v734 = vld [vmem:[%s5 + $0xc0] sm:$0xff]
      %v735 = vld [vmem:[%s5 + $0xc8] sm:$0xff]
      %v736 = vld [vmem:[%s5 + $0xd0] sm:$0xff]
      %v737 = vld [vmem:[%s5 + $0xd8] sm:$0xff]
      %v738 = vld [vmem:[%s5 + $0xe0] sm:$0xff]
      %v739 = vld [vmem:[%s5 + $0xe8] sm:$0xff]
      %v740 = vld [vmem:[%s5 + $0xf0] sm:$0xff]
      %v741 = vld [vmem:[%s5 + $0xf8] sm:$0xff]
      %v742 = vld [vmem:[%s5 + $0x100] sm:$0xff]
      %v743 = vld [vmem:[%s5 + $0x108] sm:$0xff]
      %v744 = vld [vmem:[%s5 + $0x110] sm:$0xff]
      %v745 = vld [vmem:[%s5 + $0x118] sm:$0xff]
      %v746 = vld [vmem:[%s5 + $0x120] sm:$0xff]
      %v747 = vld [vmem:[%s5 + $0x128] sm:$0xff]
      %v748 = vld [vmem:[%s5 + $0x130] sm:$0xff]
      %v749 = vld [vmem:[%s5 + $0x138] sm:$0xff]
      %v750 = vld [vmem:[%s5 + $0x140] sm:$0xff]
      %v751 = vld [vmem:[%s5 + $0x148] sm:$0xff]
      %v752 = vld [vmem:[%s5 + $0x150] sm:$0xff]
      %v753 = vld [vmem:[%s5 + $0x158] sm:$0xff]
      %v754 = vld [vmem:[%s5 + $0x160] sm:$0xff]
      %v755 = vld [vmem:[%s5 + $0x168] sm:$0xff]
      %v756 = vld [vmem:[%s5 + $0x170] sm:$0xff]
      %v757 = vld [vmem:[%s5 + $0x178] sm:$0xff]
      %v758 = vld [vmem:[%s6] sm:$0x1]
      %v760 = vlaneseq
      %v761 = vshrl.u32 %v760, 7
      %v762 = vsub.s32 0, %v761
      %v763 = vrot.slane %v758, %v762
      %s765 = smul.u32 0, 3
      %s766 = smul.addr %s765, 8
      %s767 = scalar_lea.vmem [#allocation2], %s766
      %v768 = vld [vmem:[%s767] sm:$0xff]
      %v769 = vld [vmem:[%s767 + $0x8] sm:$0xff]
      %v770 = vld [vmem:[%s767 + $0x10] sm:$0xff]
      %771 = vmatprep.subr.mxu0 %v756
      %772 = vmatpush1.msra.mxu0 %v755
      %773 = vmatprep.subr.mxu0 %v753
      %774 = vmatpush1.msra.mxu0 %v752
      %775 = vmatprep.subr.mxu0 %v750
      %776 = vmatpush1.msra.mxu0 %v749
      %777 = vmatprep.subr.mxu0 %v747
      %778 = vmatpush1.msra.mxu0 %v746
      %779 = vmatprep.subr.mxu0 %v744
      %780 = vmatpush1.msra.mxu0 %v743
      %781 = vmatprep.subr.mxu0 %v741
      %782 = vmatpush1.msra.mxu0 %v740
      %783 = vmatprep.subr.mxu0 %v738
      %784 = vmatpush1.msra.mxu0 %v737
      %785 = vmatprep.subr.mxu0 %v735
      %786 = vmatpush1.msra.mxu0 %v734
      %787 = vmatprep.subr.mxu0 %v732
      %788 = vmatpush1.msra.mxu0 %v731
      %789 = vmatprep.subr.mxu0 %v729
      %790 = vmatpush1.msra.mxu0 %v728
      %791 = vmatprep.subr.mxu0 %v726
      %792 = vmatpush1.msra.mxu0 %v725
      %793 = vmatprep.subr.mxu0 %v723
      %794 = vmatpush1.msra.mxu0 %v722
      %795 = vmatprep.subr.mxu0 %v720
      %796 = vmatpush1.msra.mxu0 %v719
      %797 = vmatprep.subr.mxu0 %v717
      %798 = vmatpush1.msra.mxu0 %v716
      %799 = vmatprep.subr.mxu0 %v714
      %800 = vmatpush1.msra.mxu0 %v713
      %801 = vmatprep.subr.mxu0 %v711
      %802 = vmatpush1.msra.mxu0 %v710
      %803 = vmatprep.subr.mxu0 0.0
      %804 = vmatpush2.msra.mxu0 0.0
      %805 = vmatprep.subr.mxu0 0.0
      %806 = vmatpush2.msra.mxu0 0.0
      %807 = vmatprep.subr.mxu0 0.0
      %808 = vmatpush2.msra.mxu0 0.0
      %809 = vmatprep.subr.mxu0 0.0
      %810 = vmatpush2.msra.mxu0 0.0
      %811 = vmatprep.subr.mxu0 0.0
      %812 = vmatpush2.msra.mxu0 0.0
      %813 = vmatprep.subr.mxu0 0.0
      %814 = vmatpush2.msra.mxu0 0.0
      %815 = vmatprep.subr.mxu0 0.0
      %816 = vmatpush2.msra.mxu0 0.0
      %817 = vmatprep.subr.mxu0 0.0
      %818 = vmatpush2.msra.mxu0 0.0
      %819 = vmatprep.subr.mxu0 0.0
      %820 = vmatpush2.msra.mxu0 0.0
      %821 = vmatprep.subr.mxu0 0.0
      %822 = vmatpush2.msra.mxu0 0.0
      %823 = vmatprep.subr.mxu0 0.0
      %824 = vmatpush2.msra.mxu0 0.0
      %825 = vmatprep.subr.mxu0 0.0
      %826 = vmatpush2.msra.mxu0 0.0
      %827 = vmatprep.subr.mxu0 0.0
      %828 = vmatpush2.msra.mxu0 0.0
      %829 = vmatprep.subr.mxu0 0.0
      %830 = vmatpush2.msra.mxu0 0.0
      %831 = vmatprep.subr.mxu0 0.0
      %832 = vmatpush2.msra.mxu0 0.0
      %833 = vmatprep.subr.mxu0 0.0
      %834 = vmatpush2.msra.mxu0 0.0
      %835 = vmatprep.mubr.f32.mxu0 0.0
      %836 = vmatmul.mubr.f32.gmra.mxu0 0.0
      %v837 = vpop.f32.mrf.mxu0
      %v838 = vadd.f32 0.0, %v837
      %v839 = vpop.f32.mrf.mxu0
      %v840 = vadd.f32 0.0, %v839
      %841 = vdwg.mxu0
      %842 = vmatprep.subr.mxu0 0.0
      %843 = vmatpush1.msra.mxu0 %v757
      %844 = vmatprep.subr.mxu0 0.0
      %845 = vmatpush1.msra.mxu0 %v754
      %846 = vmatprep.subr.mxu0 0.0
      %847 = vmatpush1.msra.mxu0 %v751
      %848 = vmatprep.subr.mxu0 0.0
      %849 = vmatpush1.msra.mxu0 %v748
      %850 = vmatprep.subr.mxu0 0.0
      %851 = vmatpush1.msra.mxu0 %v745
      %852 = vmatprep.subr.mxu0 0.0
      %853 = vmatpush1.msra.mxu0 %v742
      %854 = vmatprep.subr.mxu0 0.0
      %855 = vmatpush1.msra.mxu0 %v739
      %856 = vmatprep.subr.mxu0 0.0
      %857 = vmatpush1.msra.mxu0 %v736
      %858 = vmatprep.subr.mxu0 0.0
      %859 = vmatpush1.msra.mxu0 %v733
      %860 = vmatprep.subr.mxu0 0.0
      %861 = vmatpush1.msra.mxu0 %v730
      %862 = vmatprep.subr.mxu0 0.0
      %863 = vmatpush1.msra.mxu0 %v727
      %864 = vmatprep.subr.mxu0 0.0
      %865 = vmatpush1.msra.mxu0 %v724
      %866 = vmatprep.subr.mxu0 0.0
      %867 = vmatpush1.msra.mxu0 %v721
      %868 = vmatprep.subr.mxu0 0.0
      %869 = vmatpush1.msra.mxu0 %v718
      %870 = vmatprep.subr.mxu0 0.0
      %871 = vmatpush1.msra.mxu0 %v715
      %872 = vmatprep.subr.mxu0 0.0
      %873 = vmatpush1.msra.mxu0 %v712
      %874 = vmatprep.subr.mxu0 0.0
      %875 = vmatpush2.msra.mxu0 0.0
      %876 = vmatprep.subr.mxu0 0.0
      %877 = vmatpush2.msra.mxu0 0.0
      %878 = vmatprep.subr.mxu0 0.0
      %879 = vmatpush2.msra.mxu0 0.0
      %880 = vmatprep.subr.mxu0 0.0
      %881 = vmatpush2.msra.mxu0 0.0
      %882 = vmatprep.subr.mxu0 0.0
      %883 = vmatpush2.msra.mxu0 0.0
      %884 = vmatprep.subr.mxu0 0.0
      %885 = vmatpush2.msra.mxu0 0.0
      %886 = vmatprep.subr.mxu0 0.0
      %887 = vmatpush2.msra.mxu0 0.0
      %888 = vmatprep.subr.mxu0 0.0
      %889 = vmatpush2.msra.mxu0 0.0
      %890 = vmatprep.subr.mxu0 0.0
      %891 = vmatpush2.msra.mxu0 0.0
      %892 = vmatprep.subr.mxu0 0.0
      %893 = vmatpush2.msra.mxu0 0.0
      %894 = vmatprep.subr.mxu0 0.0
      %895 = vmatpush2.msra.mxu0 0.0
      %896 = vmatprep.subr.mxu0 0.0
      %897 = vmatpush2.msra.mxu0 0.0
      %898 = vmatprep.subr.mxu0 0.0
      %899 = vmatpush2.msra.mxu0 0.0
      %900 = vmatprep.subr.mxu0 0.0
      %901 = vmatpush2.msra.mxu0 0.0
      %902 = vmatprep.subr.mxu0 0.0
      %903 = vmatpush2.msra.mxu0 0.0
      %904 = vmatprep.subr.mxu0 0.0
      %905 = vmatpush2.msra.mxu0 0.0
      %906 = vmatprep.mubr.f32.mxu0 0.0
      %907 = vmatmul.mubr.f32.gmra.mxu0 0.0
      %v908 = vpop.f32.mrf.mxu0
      %v909 = vadd.f32 0.0, %v908
      %v910 = vpop.f32.mrf.mxu0
      %911 = vdwg.mxu0
      %v912 = vadd.f32 %v768, %v838
      %v913 = vxor.u32 %v912, 2147483648
      %v914 = vmul.f32 %v913, 1.442695
      %v915 = vpow.pop %v914
      %v916 = vadd.f32 %v915, 1.0
      %v917 = vrcp.pop %v916
      %v918 = vmul.f32 1.0, %v917
      %v919 = vadd.f32 %v769, %v840
      %v920 = vxor.u32 %v919, 2147483648
      %v921 = vmul.f32 %v920, 1.442695
      %v922 = vpow.pop %v921
      %v923 = vadd.f32 %v922, 1.0
      %v924 = vrcp.pop %v923
      %v925 = vmul.f32 1.0, %v924
      %v926 = vadd.f32 %v909, %v763
      %v927 = vmul.f32 %v918, %v926
      %v928 = vadd.f32 %v770, %v927
      %v929 = vtanh.pop %v928
      %v930 = vsub.f32 1.0, %v925
      %v931 = vmul.f32 %v930, %v929
      %v932 = vmul.f32 %v925, 0.0
      %v933 = vadd.f32 %v931, %v932
      %934 = vst [vmem:[#allocation3] sm:$0xff] %v933
      %s935 = smul.u32 1, 3
      %s936 = smul.addr %s935, 8
      %s937 = scalar_lea.vmem [#allocation2], %s936
      %v938 = vld [vmem:[%s937] sm:$0xff]
      %v939 = vld [vmem:[%s937 + $0x8] sm:$0xff]
      %v940 = vld [vmem:[%s937 + $0x10] sm:$0xff]
      %941 = vmatprep.subr.mxu0 %v756
      %942 = vmatpush1.msra.mxu0 %v755
      %943 = vmatprep.subr.mxu0 %v753
      %944 = vmatpush1.msra.mxu0 %v752
      %945 = vmatprep.subr.mxu0 %v750
      %946 = vmatpush1.msra.mxu0 %v749
      %947 = vmatprep.subr.mxu0 %v747
      %948 = vmatpush1.msra.mxu0 %v746
      %949 = vmatprep.subr.mxu0 %v744
      %950 = vmatpush1.msra.mxu0 %v743
      %951 = vmatprep.subr.mxu0 %v741
      %952 = vmatpush1.msra.mxu0 %v740
      %953 = vmatprep.subr.mxu0 %v738
      %954 = vmatpush1.msra.mxu0 %v737
      %955 = vmatprep.subr.mxu0 %v735
      %956 = vmatpush1.msra.mxu0 %v734
      %957 = vmatprep.subr.mxu0 %v732
      %958 = vmatpush1.msra.mxu0 %v731
      %959 = vmatprep.subr.mxu0 %v729
      %960 = vmatpush1.msra.mxu0 %v728
      %961 = vmatprep.subr.mxu0 %v726
      %962 = vmatpush1.msra.mxu0 %v725
      %963 = vmatprep.subr.mxu0 %v723
      %964 = vmatpush1.msra.mxu0 %v722
      %965 = vmatprep.subr.mxu0 %v720
      %966 = vmatpush1.msra.mxu0 %v719
      %967 = vmatprep.subr.mxu0 %v717
      %968 = vmatpush1.msra.mxu0 %v716
      %969 = vmatprep.subr.mxu0 %v714
      %970 = vmatpush1.msra.mxu0 %v713
      %971 = vmatprep.subr.mxu0 %v711
      %972 = vmatpush1.msra.mxu0 %v710
      %973 = vmatprep.subr.mxu0 0.0
      %974 = vmatpush2.msra.mxu0 0.0
      %975 = vmatprep.subr.mxu0 0.0
      %976 = vmatpush2.msra.mxu0 0.0
      %977 = vmatprep.subr.mxu0 0.0
      %978 = vmatpush2.msra.mxu0 0.0
      %979 = vmatprep.subr.mxu0 0.0
      %980 = vmatpush2.msra.mxu0 0.0
      %981 = vmatprep.subr.mxu0 0.0
      %982 = vmatpush2.msra.mxu0 0.0
      %983 = vmatprep.subr.mxu0 0.0
      %984 = vmatpush2.msra.mxu0 0.0
      %985 = vmatprep.subr.mxu0 0.0
      %986 = vmatpush2.msra.mxu0 0.0
      %987 = vmatprep.subr.mxu0 0.0
      %988 = vmatpush2.msra.mxu0 0.0
      %989 = vmatprep.subr.mxu0 0.0
      %990 = vmatpush2.msra.mxu0 0.0
      %991 = vmatprep.subr.mxu0 0.0
      %992 = vmatpush2.msra.mxu0 0.0
      %993 = vmatprep.subr.mxu0 0.0
      %994 = vmatpush2.msra.mxu0 0.0
      %995 = vmatprep.subr.mxu0 0.0
      %996 = vmatpush2.msra.mxu0 0.0
      %997 = vmatprep.subr.mxu0 0.0
      %998 = vmatpush2.msra.mxu0 0.0
      %999 = vmatprep.subr.mxu0 0.0
      %1000 = vmatpush2.msra.mxu0 0.0
      %1001 = vmatprep.subr.mxu0 0.0
      %1002 = vmatpush2.msra.mxu0 0.0
      %1003 = vmatprep.subr.mxu0 0.0
      %1004 = vmatpush2.msra.mxu0 0.0
      %1005 = vmatprep.mubr.f32.mxu0 0.0
      %1006 = vmatmul.mubr.f32.gmra.mxu0 %v933
      %v1007 = vpop.f32.mrf.mxu0
      %v1008 = vadd.f32 0.0, %v1007
      %v1009 = vpop.f32.mrf.mxu0
      %v1010 = vadd.f32 0.0, %v1009
      %1011 = vdwg.mxu0
      %1012 = vmatprep.subr.mxu0 0.0
      %1013 = vmatpush1.msra.mxu0 %v757
      %1014 = vmatprep.subr.mxu0 0.0
      %1015 = vmatpush1.msra.mxu0 %v754
      %1016 = vmatprep.subr.mxu0 0.0
      %1017 = vmatpush1.msra.mxu0 %v751
      %1018 = vmatprep.subr.mxu0 0.0
      %1019 = vmatpush1.msra.mxu0 %v748
      %1020 = vmatprep.subr.mxu0 0.0
      %1021 = vmatpush1.msra.mxu0 %v745
      %1022 = vmatprep.subr.mxu0 0.0
      %1023 = vmatpush1.msra.mxu0 %v742
      %1024 = vmatprep.subr.mxu0 0.0
      %1025 = vmatpush1.msra.mxu0 %v739
      %1026 = vmatprep.subr.mxu0 0.0
      %1027 = vmatpush1.msra.mxu0 %v736
      %1028 = vmatprep.subr.mxu0 0.0
      %1029 = vmatpush1.msra.mxu0 %v733
      %1030 = vmatprep.subr.mxu0 0.0
      %1031 = vmatpush1.msra.mxu0 %v730
      %1032 = vmatprep.subr.mxu0 0.0
      %1033 = vmatpush1.msra.mxu0 %v727
      %1034 = vmatprep.subr.mxu0 0.0
      %1035 = vmatpush1.msra.mxu0 %v724
      %1036 = vmatprep.subr.mxu0 0.0
      %1037 = vmatpush1.msra.mxu0 %v721
      %1038 = vmatprep.subr.mxu0 0.0
      %1039 = vmatpush1.msra.mxu0 %v718
      %1040 = vmatprep.subr.mxu0 0.0
      %1041 = vmatpush1.msra.mxu0 %v715
      %1042 = vmatprep.subr.mxu0 0.0
      %1043 = vmatpush1.msra.mxu0 %v712
      %1044 = vmatprep.subr.mxu0 0.0
      %1045 = vmatpush2.msra.mxu0 0.0
      %1046 = vmatprep.subr.mxu0 0.0
      %1047 = vmatpush2.msra.mxu0 0.0
      %1048 = vmatprep.subr.mxu0 0.0
      %1049 = vmatpush2.msra.mxu0 0.0
      %1050 = vmatprep.subr.mxu0 0.0
      %1051 = vmatpush2.msra.mxu0 0.0
      %1052 = vmatprep.subr.mxu0 0.0
      %1053 = vmatpush2.msra.mxu0 0.0
      %1054 = vmatprep.subr.mxu0 0.0
      %1055 = vmatpush2.msra.mxu0 0.0
      %1056 = vmatprep.subr.mxu0 0.0
      %1057 = vmatpush2.msra.mxu0 0.0
      %1058 = vmatprep.subr.mxu0 0.0
      %1059 = vmatpush2.msra.mxu0 0.0
      %1060 = vmatprep.subr.mxu0 0.0
      %1061 = vmatpush2.msra.mxu0 0.0
      %1062 = vmatprep.subr.mxu0 0.0
      %1063 = vmatpush2.msra.mxu0 0.0
      %1064 = vmatprep.subr.mxu0 0.0
      %1065 = vmatpush2.msra.mxu0 0.0
      %1066 = vmatprep.subr.mxu0 0.0
      %1067 = vmatpush2.msra.mxu0 0.0
      %1068 = vmatprep.subr.mxu0 0.0
      %1069 = vmatpush2.msra.mxu0 0.0
      %1070 = vmatprep.subr.mxu0 0.0
      %1071 = vmatpush2.msra.mxu0 0.0
      %1072 = vmatprep.subr.mxu0 0.0
      %1073 = vmatpush2.msra.mxu0 0.0
      %1074 = vmatprep.subr.mxu0 0.0
      %1075 = vmatpush2.msra.mxu0 0.0
      %1076 = vmatprep.mubr.f32.mxu0 0.0
      %1077 = vmatmul.mubr.f32.gmra.mxu0 %v933
      %v1078 = vpop.f32.mrf.mxu0
      %v1079 = vadd.f32 0.0, %v1078
      %v1080 = vpop.f32.mrf.mxu0
      %1081 = vdwg.mxu0
      %v1082 = vadd.f32 %v938, %v1008
      %v1083 = vxor.u32 %v1082, 2147483648
      %v1084 = vmul.f32 %v1083, 1.442695
      %v1085 = vpow.pop %v1084
      %v1086 = vadd.f32 %v1085, 1.0
      %v1087 = vrcp.pop %v1086
      %v1088 = vmul.f32 1.0, %v1087
      %v1089 = vadd.f32 %v939, %v1010
      %v1090 = vxor.u32 %v1089, 2147483648
      %v1091 = vmul.f32 %v1090, 1.442695
      %v1092 = vpow.pop %v1091
      %v1093 = vadd.f32 %v1092, 1.0
      %v1094 = vrcp.pop %v1093
      %v1095 = vmul.f32 1.0, %v1094
      %v1096 = vadd.f32 %v1079, %v763
      %v1097 = vmul.f32 %v1088, %v1096
      %v1098 = vadd.f32 %v940, %v1097
      %v1099 = vtanh.pop %v1098
      %v1100 = vsub.f32 1.0, %v1095
      %v1101 = vmul.f32 %v1100, %v1099
      %v1102 = vmul.f32 %v1095, %v933
      %v1103 = vadd.f32 %v1101, %v1102
      %s1104 = scalar_lea.vmem [#allocation3], 8
      %1105 = vst [vmem:[%s1104] sm:$0xff] %v1103
      %s1106 = smul.u32 2, 3
      %s1107 = smul.addr %s1106, 8
      %s1108 = scalar_lea.vmem [#allocation2], %s1107
      %v1109 = vld [vmem:[%s1108] sm:$0xff]
      %v1110 = vld [vmem:[%s1108 + $0x8] sm:$0xff]
      %v1111 = vld [vmem:[%s1108 + $0x10] sm:$0xff]
      %1112 = vmatprep.subr.mxu0 %v756
      %1113 = vmatpush1.msra.mxu0 %v755
      %1114 = vmatprep.subr.mxu0 %v753
      %1115 = vmatpush1.msra.mxu0 %v752
      %1116 = vmatprep.subr.mxu0 %v750
      %1117 = vmatpush1.msra.mxu0 %v749
      %1118 = vmatprep.subr.mxu0 %v747
      %1119 = vmatpush1.msra.mxu0 %v746
      %1120 = vmatprep.subr.mxu0 %v744
      %1121 = vmatpush1.msra.mxu0 %v743
      %1122 = vmatprep.subr.mxu0 %v741
      %1123 = vmatpush1.msra.mxu0 %v740
      %1124 = vmatprep.subr.mxu0 %v738
      %1125 = vmatpush1.msra.mxu0 %v737
      %1126 = vmatprep.subr.mxu0 %v735
      %1127 = vmatpush1.msra.mxu0 %v734
      %1128 = vmatprep.subr.mxu0 %v732
      %1129 = vmatpush1.msra.mxu0 %v731
      %1130 = vmatprep.subr.mxu0 %v729
      %1131 = vmatpush1.msra.mxu0 %v728
      %1132 = vmatprep.subr.mxu0 %v726
      %1133 = vmatpush1.msra.mxu0 %v725
      %1134 = vmatprep.subr.mxu0 %v723
      %1135 = vmatpush1.msra.mxu0 %v722
      %1136 = vmatprep.subr.mxu0 %v720
      %1137 = vmatpush1.msra.mxu0 %v719
      %1138 = vmatprep.subr.mxu0 %v717
      %1139 = vmatpush1.msra.mxu0 %v716
      %1140 = vmatprep.subr.mxu0 %v714
      %1141 = vmatpush1.msra.mxu0 %v713
      %1142 = vmatprep.subr.mxu0 %v711
      %1143 = vmatpush1.msra.mxu0 %v710
      %1144 = vmatprep.subr.mxu0 0.0
      %1145 = vmatpush2.msra.mxu0 0.0
      %1146 = vmatprep.subr.mxu0 0.0
      %1147 = vmatpush2.msra.mxu0 0.0
      %1148 = vmatprep.subr.mxu0 0.0
      %1149 = vmatpush2.msra.mxu0 0.0
      %1150 = vmatprep.subr.mxu0 0.0
      %1151 = vmatpush2.msra.mxu0 0.0
      %1152 = vmatprep.subr.mxu0 0.0
      %1153 = vmatpush2.msra.mxu0 0.0
      %1154 = vmatprep.subr.mxu0 0.0
      %1155 = vmatpush2.msra.mxu0 0.0
      %1156 = vmatprep.subr.mxu0 0.0
      %1157 = vmatpush2.msra.mxu0 0.0
      %1158 = vmatprep.subr.mxu0 0.0
      %1159 = vmatpush2.msra.mxu0 0.0
      %1160 = vmatprep.subr.mxu0 0.0
      %1161 = vmatpush2.msra.mxu0 0.0
      %1162 = vmatprep.subr.mxu0 0.0
      %1163 = vmatpush2.msra.mxu0 0.0
      %1164 = vmatprep.subr.mxu0 0.0
      %1165 = vmatpush2.msra.mxu0 0.0
      %1166 = vmatprep.subr.mxu0 0.0
      %1167 = vmatpush2.msra.mxu0 0.0
      %1168 = vmatprep.subr.mxu0 0.0
      %1169 = vmatpush2.msra.mxu0 0.0
      %1170 = vmatprep.subr.mxu0 0.0
      %1171 = vmatpush2.msra.mxu0 0.0
      %1172 = vmatprep.subr.mxu0 0.0
      %1173 = vmatpush2.msra.mxu0 0.0
      %1174 = vmatprep.subr.mxu0 0.0
      %1175 = vmatpush2.msra.mxu0 0.0
      %1176 = vmatprep.mubr.f32.mxu0 0.0
      %1177 = vmatmul.mubr.f32.gmra.mxu0 %v1103
      %v1178 = vpop.f32.mrf.mxu0
      %v1179 = vadd.f32 0.0, %v1178
      %v1180 = vpop.f32.mrf.mxu0
      %v1181 = vadd.f32 0.0, %v1180
      %1182 = vdwg.mxu0
      %1183 = vmatprep.subr.mxu0 0.0
      %1184 = vmatpush1.msra.mxu0 %v757
      %1185 = vmatprep.subr.mxu0 0.0
      %1186 = vmatpush1.msra.mxu0 %v754
      %1187 = vmatprep.subr.mxu0 0.0
      %1188 = vmatpush1.msra.mxu0 %v751
      %1189 = vmatprep.subr.mxu0 0.0
      %1190 = vmatpush1.msra.mxu0 %v748
      %1191 = vmatprep.subr.mxu0 0.0
      %1192 = vmatpush1.msra.mxu0 %v745
      %1193 = vmatprep.subr.mxu0 0.0
      %1194 = vmatpush1.msra.mxu0 %v742
      %1195 = vmatprep.subr.mxu0 0.0
      %1196 = vmatpush1.msra.mxu0 %v739
      %1197 = vmatprep.subr.mxu0 0.0
      %1198 = vmatpush1.msra.mxu0 %v736
      %1199 = vmatprep.subr.mxu0 0.0
      %1200 = vmatpush1.msra.mxu0 %v733
      %1201 = vmatprep.subr.mxu0 0.0
      %1202 = vmatpush1.msra.mxu0 %v730
      %1203 = vmatprep.subr.mxu0 0.0
      %1204 = vmatpush1.msra.mxu0 %v727
      %1205 = vmatprep.subr.mxu0 0.0
      %1206 = vmatpush1.msra.mxu0 %v724
      %1207 = vmatprep.subr.mxu0 0.0
      %1208 = vmatpush1.msra.mxu0 %v721
      %1209 = vmatprep.subr.mxu0 0.0
      %1210 = vmatpush1.msra.mxu0 %v718
      %1211 = vmatprep.subr.mxu0 0.0
      %1212 = vmatpush1.msra.mxu0 %v715
      %1213 = vmatprep.subr.mxu0 0.0
      %1214 = vmatpush1.msra.mxu0 %v712
      %1215 = vmatprep.subr.mxu0 0.0
      %1216 = vmatpush2.msra.mxu0 0.0
      %1217 = vmatprep.subr.mxu0 0.0
      %1218 = vmatpush2.msra.mxu0 0.0
      %1219 = vmatprep.subr.mxu0 0.0
      %1220 = vmatpush2.msra.mxu0 0.0
      %1221 = vmatprep.subr.mxu0 0.0
      %1222 = vmatpush2.msra.mxu0 0.0
      %1223 = vmatprep.subr.mxu0 0.0
      %1224 = vmatpush2.msra.mxu0 0.0
      %1225 = vmatprep.subr.mxu0 0.0
      %1226 = vmatpush2.msra.mxu0 0.0
      %1227 = vmatprep.subr.mxu0 0.0
      %1228 = vmatpush2.msra.mxu0 0.0
      %1229 = vmatprep.subr.mxu0 0.0
      %1230 = vmatpush2.msra.mxu0 0.0
      %1231 = vmatprep.subr.mxu0 0.0
      %1232 = vmatpush2.msra.mxu0 0.0
      %1233 = vmatprep.subr.mxu0 0.0
      %1234 = vmatpush2.msra.mxu0 0.0
      %1235 = vmatprep.subr.mxu0 0.0
      %1236 = vmatpush2.msra.mxu0 0.0
      %1237 = vmatprep.subr.mxu0 0.0
      %1238 = vmatpush2.msra.mxu0 0.0
      %1239 = vmatprep.subr.mxu0 0.0
      %1240 = vmatpush2.msra.mxu0 0.0
      %1241 = vmatprep.subr.mxu0 0.0
      %1242 = vmatpush2.msra.mxu0 0.0
      %1243 = vmatprep.subr.mxu0 0.0
      %1244 = vmatpush2.msra.mxu0 0.0
      %1245 = vmatprep.subr.mxu0 0.0
      %1246 = vmatpush2.msra.mxu0 0.0
      %1247 = vmatprep.mubr.f32.mxu0 0.0
      %1248 = vmatmul.mubr.f32.gmra.mxu0 %v1103
      %v1249 = vpop.f32.mrf.mxu0
      %v1250 = vadd.f32 0.0, %v1249
      %v1251 = vpop.f32.mrf.mxu0
      %1252 = vdwg.mxu0
      %v1253 = vadd.f32 %v1109, %v1179
      %v1254 = vxor.u32 %v1253, 2147483648
      %v1255 = vmul.f32 %v1254, 1.442695
      %v1256 = vpow.pop %v1255
      %v1257 = vadd.f32 %v1256, 1.0
      %v1258 = vrcp.pop %v1257
      %v1259 = vmul.f32 1.0, %v1258
      %v1260 = vadd.f32 %v1110, %v1181
      %v1261 = vxor.u32 %v1260, 2147483648
      %v1262 = vmul.f32 %v1261, 1.442695
      %v1263 = vpow.pop %v1262
      %v1264 = vadd.f32 %v1263, 1.0
      %v1265 = vrcp.pop %v1264
      %v1266 = vmul.f32 1.0, %v1265
      %v1267 = vadd.f32 %v1250, %v763
      %v1268 = vmul.f32 %v1259, %v1267
      %v1269 = vadd.f32 %v1111, %v1268
      %v1270 = vtanh.pop %v1269
      %v1271 = vsub.f32 1.0, %v1266
      %v1272 = vmul.f32 %v1271, %v1270
      %v1273 = vmul.f32 %v1266, %v1103
      %v1274 = vadd.f32 %v1272, %v1273
      %s1275 = scalar_lea.vmem [#allocation3], 16
      %1276 = vst [vmem:[%s1275] sm:$0xff] %v1274
      %s1277 = smul.u32 3, 3
      %s1278 = smul.addr %s1277, 8
      %s1279 = scalar_lea.vmem [#allocation2], %s1278
      %v1280 = vld [vmem:[%s1279] sm:$0xff]
      %v1281 = vld [vmem:[%s1279 + $0x8] sm:$0xff]
      %v1282 = vld [vmem:[%s1279 + $0x10] sm:$0xff]
      %1283 = vmatprep.subr.mxu0 %v756
      %1284 = vmatpush1.msra.mxu0 %v755
      %1285 = vmatprep.subr.mxu0 %v753
      %1286 = vmatpush1.msra.mxu0 %v752
      %1287 = vmatprep.subr.mxu0 %v750
      %1288 = vmatpush1.msra.mxu0 %v749
      %1289 = vmatprep.subr.mxu0 %v747
      %1290 = vmatpush1.msra.mxu0 %v746
      %1291 = vmatprep.subr.mxu0 %v744
      %1292 = vmatpush1.msra.mxu0 %v743
      %1293 = vmatprep.subr.mxu0 %v741
      %1294 = vmatpush1.msra.mxu0 %v740
      %1295 = vmatprep.subr.mxu0 %v738
      %1296 = vmatpush1.msra.mxu0 %v737
      %1297 = vmatprep.subr.mxu0 %v735
      %1298 = vmatpush1.msra.mxu0 %v734
      %1299 = vmatprep.subr.mxu0 %v732
      %1300 = vmatpush1.msra.mxu0 %v731
      %1301 = vmatprep.subr.mxu0 %v729
      %1302 = vmatpush1.msra.mxu0 %v728
      %1303 = vmatprep.subr.mxu0 %v726
      %1304 = vmatpush1.msra.mxu0 %v725
      %1305 = vmatprep.subr.mxu0 %v723
      %1306 = vmatpush1.msra.mxu0 %v722
      %1307 = vmatprep.subr.mxu0 %v720
      %1308 = vmatpush1.msra.mxu0 %v719
      %1309 = vmatprep.subr.mxu0 %v717
      %1310 = vmatpush1.msra.mxu0 %v716
      %1311 = vmatprep.subr.mxu0 %v714
      %1312 = vmatpush1.msra.mxu0 %v713
      %1313 = vmatprep.subr.mxu0 %v711
      %1314 = vmatpush1.msra.mxu0 %v710
      %1315 = vmatprep.subr.mxu0 0.0
      %1316 = vmatpush2.msra.mxu0 0.0
      %1317 = vmatprep.subr.mxu0 0.0
      %1318 = vmatpush2.msra.mxu0 0.0
      %1319 = vmatprep.subr.mxu0 0.0
      %1320 = vmatpush2.msra.mxu0 0.0
      %1321 = vmatprep.subr.mxu0 0.0
      %1322 = vmatpush2.msra.mxu0 0.0
      %1323 = vmatprep.subr.mxu0 0.0
      %1324 = vmatpush2.msra.mxu0 0.0
      %1325 = vmatprep.subr.mxu0 0.0
      %1326 = vmatpush2.msra.mxu0 0.0
      %1327 = vmatprep.subr.mxu0 0.0
      %1328 = vmatpush2.msra.mxu0 0.0
      %1329 = vmatprep.subr.mxu0 0.0
      %1330 = vmatpush2.msra.mxu0 0.0
      %1331 = vmatprep.subr.mxu0 0.0
      %1332 = vmatpush2.msra.mxu0 0.0
      %1333 = vmatprep.subr.mxu0 0.0
      %1334 = vmatpush2.msra.mxu0 0.0
      %1335 = vmatprep.subr.mxu0 0.0
      %1336 = vmatpush2.msra.mxu0 0.0
      %1337 = vmatprep.subr.mxu0 0.0
      %1338 = vmatpush2.msra.mxu0 0.0
      %1339 = vmatprep.subr.mxu0 0.0
      %1340 = vmatpush2.msra.mxu0 0.0
      %1341 = vmatprep.subr.mxu0 0.0
      %1342 = vmatpush2.msra.mxu0 0.0
      %1343 = vmatprep.subr.mxu0 0.0
      %1344 = vmatpush2.msra.mxu0 0.0
      %1345 = vmatprep.subr.mxu0 0.0
      %1346 = vmatpush2.msra.mxu0 0.0
      %1347 = vmatprep.mubr.f32.mxu0 0.0
      %1348 = vmatmul.mubr.f32.gmra.mxu0 %v1274
      %v1349 = vpop.f32.mrf.mxu0
      %v1350 = vadd.f32 0.0, %v1349
      %v1351 = vpop.f32.mrf.mxu0
      %v1352 = vadd.f32 0.0, %v1351
      %1353 = vdwg.mxu0
      %1354 = vmatprep.subr.mxu0 0.0
      %1355 = vmatpush1.msra.mxu0 %v757
      %1356 = vmatprep.subr.mxu0 0.0
      %1357 = vmatpush1.msra.mxu0 %v754
      %1358 = vmatprep.subr.mxu0 0.0
      %1359 = vmatpush1.msra.mxu0 %v751
      %1360 = vmatprep.subr.mxu0 0.0
      %1361 = vmatpush1.msra.mxu0 %v748
      %1362 = vmatprep.subr.mxu0 0.0
      %1363 = vmatpush1.msra.mxu0 %v745
      %1364 = vmatprep.subr.mxu0 0.0
      %1365 = vmatpush1.msra.mxu0 %v742
      %1366 = vmatprep.subr.mxu0 0.0
      %1367 = vmatpush1.msra.mxu0 %v739
      %1368 = vmatprep.subr.mxu0 0.0
      %1369 = vmatpush1.msra.mxu0 %v736
      %1370 = vmatprep.subr.mxu0 0.0
      %1371 = vmatpush1.msra.mxu0 %v733
      %1372 = vmatprep.subr.mxu0 0.0
      %1373 = vmatpush1.msra.mxu0 %v730
      %1374 = vmatprep.subr.mxu0 0.0
      %1375 = vmatpush1.msra.mxu0 %v727
      %1376 = vmatprep.subr.mxu0 0.0
      %1377 = vmatpush1.msra.mxu0 %v724
      %1378 = vmatprep.subr.mxu0 0.0
      %1379 = vmatpush1.msra.mxu0 %v721
      %1380 = vmatprep.subr.mxu0 0.0
      %1381 = vmatpush1.msra.mxu0 %v718
      %1382 = vmatprep.subr.mxu0 0.0
      %1383 = vmatpush1.msra.mxu0 %v715
      %1384 = vmatprep.subr.mxu0 0.0
      %1385 = vmatpush1.msra.mxu0 %v712
      %1386 = vmatprep.subr.mxu0 0.0
      %1387 = vmatpush2.msra.mxu0 0.0
      %1388 = vmatprep.subr.mxu0 0.0
      %1389 = vmatpush2.msra.mxu0 0.0
      %1390 = vmatprep.subr.mxu0 0.0
      %1391 = vmatpush2.msra.mxu0 0.0
      %1392 = vmatprep.subr.mxu0 0.0
      %1393 = vmatpush2.msra.mxu0 0.0
      %1394 = vmatprep.subr.mxu0 0.0
      %1395 = vmatpush2.msra.mxu0 0.0
      %1396 = vmatprep.subr.mxu0 0.0
      %1397 = vmatpush2.msra.mxu0 0.0
      %1398 = vmatprep.subr.mxu0 0.0
      %1399 = vmatpush2.msra.mxu0 0.0
      %1400 = vmatprep.subr.mxu0 0.0
      %1401 = vmatpush2.msra.mxu0 0.0
      %1402 = vmatprep.subr.mxu0 0.0
      %1403 = vmatpush2.msra.mxu0 0.0
      %1404 = vmatprep.subr.mxu0 0.0
      %1405 = vmatpush2.msra.mxu0 0.0
      %1406 = vmatprep.subr.mxu0 0.0
      %1407 = vmatpush2.msra.mxu0 0.0
      %1408 = vmatprep.subr.mxu0 0.0
      %1409 = vmatpush2.msra.mxu0 0.0
      %1410 = vmatprep.subr.mxu0 0.0
      %1411 = vmatpush2.msra.mxu0 0.0
      %1412 = vmatprep.subr.mxu0 0.0
      %1413 = vmatpush2.msra.mxu0 0.0
      %1414 = vmatprep.subr.mxu0 0.0
      %1415 = vmatpush2.msra.mxu0 0.0
      %1416 = vmatprep.subr.mxu0 0.0
      %1417 = vmatpush2.msra.mxu0 0.0
      %1418 = vmatprep.mubr.f32.mxu0 0.0
      %1419 = vmatmul.mubr.f32.gmra.mxu0 %v1274
      %v1420 = vpop.f32.mrf.mxu0
      %v1421 = vadd.f32 0.0, %v1420
      %v1422 = vpop.f32.mrf.mxu0
      %1423 = vdwg.mxu0
      %v1424 = vadd.f32 %v1280, %v1350
      %v1425 = vxor.u32 %v1424, 2147483648
      %v1426 = vmul.f32 %v1425, 1.442695
      %v1427 = vpow.pop %v1426
      %v1428 = vadd.f32 %v1427, 1.0
      %v1429 = vrcp.pop %v1428
      %v1430 = vmul.f32 1.0, %v1429
      %v1431 = vadd.f32 %v1281, %v1352
      %v1432 = vxor.u32 %v1431, 2147483648
      %v1433 = vmul.f32 %v1432, 1.442695
      %v1434 = vpow.pop %v1433
      %v1435 = vadd.f32 %v1434, 1.0
      %v1436 = vrcp.pop %v1435
      %v1437 = vmul.f32 1.0, %v1436
      %v1438 = vadd.f32 %v1421, %v763
      %v1439 = vmul.f32 %v1430, %v1438
      %v1440 = vadd.f32 %v1282, %v1439
      %v1441 = vtanh.pop %v1440
      %v1442 = vsub.f32 1.0, %v1437
      %v1443 = vmul.f32 %v1442, %v1441
      %v1444 = vmul.f32 %v1437, %v1274
      %v1445 = vadd.f32 %v1443, %v1444
      %s1446 = scalar_lea.vmem [#allocation3], 24
      %1447 = vst [vmem:[%s1446] sm:$0xff] %v1445
      %s1448 = smul.u32 4, 3
      %s1449 = smul.addr %s1448, 8
      %s1450 = scalar_lea.vmem [#allocation2], %s1449
      %v1451 = vld [vmem:[%s1450] sm:$0xff]
      %v1452 = vld [vmem:[%s1450 + $0x8] sm:$0xff]
      %v1453 = vld [vmem:[%s1450 + $0x10] sm:$0xff]
      %1454 = vmatprep.subr.mxu0 %v756
      %1455 = vmatpush1.msra.mxu0 %v755
      %1456 = vmatprep.subr.mxu0 %v753
      %1457 = vmatpush1.msra.mxu0 %v752
      %1458 = vmatprep.subr.mxu0 %v750
      %1459 = vmatpush1.msra.mxu0 %v749
      %1460 = vmatprep.subr.mxu0 %v747
      %1461 = vmatpush1.msra.mxu0 %v746
      %1462 = vmatprep.subr.mxu0 %v744
      %1463 = vmatpush1.msra.mxu0 %v743
      %1464 = vmatprep.subr.mxu0 %v741
      %1465 = vmatpush1.msra.mxu0 %v740
      %1466 = vmatprep.subr.mxu0 %v738
      %1467 = vmatpush1.msra.mxu0 %v737
      %1468 = vmatprep.subr.mxu0 %v735
      %1469 = vmatpush1.msra.mxu0 %v734
      %1470 = vmatprep.subr.mxu0 %v732
      %1471 = vmatpush1.msra.mxu0 %v731
      %1472 = vmatprep.subr.mxu0 %v729
      %1473 = vmatpush1.msra.mxu0 %v728
      %1474 = vmatprep.subr.mxu0 %v726
      %1475 = vmatpush1.msra.mxu0 %v725
      %1476 = vmatprep.subr.mxu0 %v723
      %1477 = vmatpush1.msra.mxu0 %v722
      %1478 = vmatprep.subr.mxu0 %v720
      %1479 = vmatpush1.msra.mxu0 %v719
      %1480 = vmatprep.subr.mxu0 %v717
      %1481 = vmatpush1.msra.mxu0 %v716
      %1482 = vmatprep.subr.mxu0 %v714
      %1483 = vmatpush1.msra.mxu0 %v713
      %1484 = vmatprep.subr.mxu0 %v711
      %1485 = vmatpush1.msra.mxu0 %v710
      %1486 = vmatprep.subr.mxu0 0.0
      %1487 = vmatpush2.msra.mxu0 0.0
      %1488 = vmatprep.subr.mxu0 0.0
      %1489 = vmatpush2.msra.mxu0 0.0
      %1490 = vmatprep.subr.mxu0 0.0
      %1491 = vmatpush2.msra.mxu0 0.0
      %1492 = vmatprep.subr.mxu0 0.0
      %1493 = vmatpush2.msra.mxu0 0.0
      %1494 = vmatprep.subr.mxu0 0.0
      %1495 = vmatpush2.msra.mxu0 0.0
      %1496 = vmatprep.subr.mxu0 0.0
      %1497 = vmatpush2.msra.mxu0 0.0
      %1498 = vmatprep.subr.mxu0 0.0
      %1499 = vmatpush2.msra.mxu0 0.0
      %1500 = vmatprep.subr.mxu0 0.0
      %1501 = vmatpush2.msra.mxu0 0.0
      %1502 = vmatprep.subr.mxu0 0.0
      %1503 = vmatpush2.msra.mxu0 0.0
      %1504 = vmatprep.subr.mxu0 0.0
      %1505 = vmatpush2.msra.mxu0 0.0
      %1506 = vmatprep.subr.mxu0 0.0
      %1507 = vmatpush2.msra.mxu0 0.0
      %1508 = vmatprep.subr.mxu0 0.0
      %1509 = vmatpush2.msra.mxu0 0.0
      %1510 = vmatprep.subr.mxu0 0.0
      %1511 = vmatpush2.msra.mxu0 0.0
      %1512 = vmatprep.subr.mxu0 0.0
      %1513 = vmatpush2.msra.mxu0 0.0
      %1514 = vmatprep.subr.mxu0 0.0
      %1515 = vmatpush2.msra.mxu0 0.0
      %1516 = vmatprep.subr.mxu0 0.0
      %1517 = vmatpush2.msra.mxu0 0.0
      %1518 = vmatprep.mubr.f32.mxu0 0.0
      %1519 = vmatmul.mubr.f32.gmra.mxu0 %v1445
      %v1520 = vpop.f32.mrf.mxu0
      %v1521 = vadd.f32 0.0, %v1520
      %v1522 = vpop.f32.mrf.mxu0
      %v1523 = vadd.f32 0.0, %v1522
      %1524 = vdwg.mxu0
      %1525 = vmatprep.subr.mxu0 0.0
      %1526 = vmatpush1.msra.mxu0 %v757
      %1527 = vmatprep.subr.mxu0 0.0
      %1528 = vmatpush1.msra.mxu0 %v754
      %1529 = vmatprep.subr.mxu0 0.0
      %1530 = vmatpush1.msra.mxu0 %v751
      %1531 = vmatprep.subr.mxu0 0.0
      %1532 = vmatpush1.msra.mxu0 %v748
      %1533 = vmatprep.subr.mxu0 0.0
      %1534 = vmatpush1.msra.mxu0 %v745
      %1535 = vmatprep.subr.mxu0 0.0
      %1536 = vmatpush1.msra.mxu0 %v742
      %1537 = vmatprep.subr.mxu0 0.0
      %1538 = vmatpush1.msra.mxu0 %v739
      %1539 = vmatprep.subr.mxu0 0.0
      %1540 = vmatpush1.msra.mxu0 %v736
      %1541 = vmatprep.subr.mxu0 0.0
      %1542 = vmatpush1.msra.mxu0 %v733
      %1543 = vmatprep.subr.mxu0 0.0
      %1544 = vmatpush1.msra.mxu0 %v730
      %1545 = vmatprep.subr.mxu0 0.0
      %1546 = vmatpush1.msra.mxu0 %v727
      %1547 = vmatprep.subr.mxu0 0.0
      %1548 = vmatpush1.msra.mxu0 %v724
      %1549 = vmatprep.subr.mxu0 0.0
      %1550 = vmatpush1.msra.mxu0 %v721
      %1551 = vmatprep.subr.mxu0 0.0
      %1552 = vmatpush1.msra.mxu0 %v718
      %1553 = vmatprep.subr.mxu0 0.0
      %1554 = vmatpush1.msra.mxu0 %v715
      %1555 = vmatprep.subr.mxu0 0.0
      %1556 = vmatpush1.msra.mxu0 %v712
      %1557 = vmatprep.subr.mxu0 0.0
      %1558 = vmatpush2.msra.mxu0 0.0
      %1559 = vmatprep.subr.mxu0 0.0
      %1560 = vmatpush2.msra.mxu0 0.0
      %1561 = vmatprep.subr.mxu0 0.0
      %1562 = vmatpush2.msra.mxu0 0.0
      %1563 = vmatprep.subr.mxu0 0.0
      %1564 = vmatpush2.msra.mxu0 0.0
      %1565 = vmatprep.subr.mxu0 0.0
      %1566 = vmatpush2.msra.mxu0 0.0
      %1567 = vmatprep.subr.mxu0 0.0
      %1568 = vmatpush2.msra.mxu0 0.0
      %1569 = vmatprep.subr.mxu0 0.0
      %1570 = vmatpush2.msra.mxu0 0.0
      %1571 = vmatprep.subr.mxu0 0.0
      %1572 = vmatpush2.msra.mxu0 0.0
      %1573 = vmatprep.subr.mxu0 0.0
      %1574 = vmatpush2.msra.mxu0 0.0
      %1575 = vmatprep.subr.mxu0 0.0
      %1576 = vmatpush2.msra.mxu0 0.0
      %1577 = vmatprep.subr.mxu0 0.0
      %1578 = vmatpush2.msra.mxu0 0.0
      %1579 = vmatprep.subr.mxu0 0.0
      %1580 = vmatpush2.msra.mxu0 0.0
      %1581 = vmatprep.subr.mxu0 0.0
      %1582 = vmatpush2.msra.mxu0 0.0
      %1583 = vmatprep.subr.mxu0 0.0
      %1584 = vmatpush2.msra.mxu0 0.0
      %1585 = vmatprep.subr.mxu0 0.0
      %1586 = vmatpush2.msra.mxu0 0.0
      %1587 = vmatprep.subr.mxu0 0.0
      %1588 = vmatpush2.msra.mxu0 0.0
      %1589 = vmatprep.mubr.f32.mxu0 0.0
      %1590 = vmatmul.mubr.f32.gmra.mxu0 %v1445
      %v1591 = vpop.f32.mrf.mxu0
      %v1592 = vadd.f32 0.0, %v1591
      %v1593 = vpop.f32.mrf.mxu0
      %1594 = vdwg.mxu0
      %v1595 = vadd.f32 %v1451, %v1521
      %v1596 = vxor.u32 %v1595, 2147483648
      %v1597 = vmul.f32 %v1596, 1.442695
      %v1598 = vpow.pop %v1597
      %v1599 = vadd.f32 %v1598, 1.0
      %v1600 = vrcp.pop %v1599
      %v1601 = vmul.f32 1.0, %v1600
      %v1602 = vadd.f32 %v1452, %v1523
      %v1603 = vxor.u32 %v1602, 2147483648
      %v1604 = vmul.f32 %v1603, 1.442695
      %v1605 = vpow.pop %v1604
      %v1606 = vadd.f32 %v1605, 1.0
      %v1607 = vrcp.pop %v1606
      %v1608 = vmul.f32 1.0, %v1607
      %v1609 = vadd.f32 %v1592, %v763
      %v1610 = vmul.f32 %v1601, %v1609
      %v1611 = vadd.f32 %v1453, %v1610
      %v1612 = vtanh.pop %v1611
      %v1613 = vsub.f32 1.0, %v1608
      %v1614 = vmul.f32 %v1613, %v1612
      %v1615 = vmul.f32 %v1608, %v1445
      %v1616 = vadd.f32 %v1614, %v1615
      %s1617 = scalar_lea.vmem [#allocation3], 32
      %1618 = vst [vmem:[%s1617] sm:$0xff] %v1616
      %s1619 = smul.u32 5, 3
      %s1620 = smul.addr %s1619, 8
      %s1621 = scalar_lea.vmem [#allocation2], %s1620
      %v1622 = vld [vmem:[%s1621] sm:$0xff]
      %v1623 = vld [vmem:[%s1621 + $0x8] sm:$0xff]
      %v1624 = vld [vmem:[%s1621 + $0x10] sm:$0xff]
      %1625 = vmatprep.subr.mxu0 %v756
      %1626 = vmatpush1.msra.mxu0 %v755
      %1627 = vmatprep.subr.mxu0 %v753
      %1628 = vmatpush1.msra.mxu0 %v752
      %1629 = vmatprep.subr.mxu0 %v750
      %1630 = vmatpush1.msra.mxu0 %v749
      %1631 = vmatprep.subr.mxu0 %v747
      %1632 = vmatpush1.msra.mxu0 %v746
      %1633 = vmatprep.subr.mxu0 %v744
      %1634 = vmatpush1.msra.mxu0 %v743
      %1635 = vmatprep.subr.mxu0 %v741
      %1636 = vmatpush1.msra.mxu0 %v740
      %1637 = vmatprep.subr.mxu0 %v738
      %1638 = vmatpush1.msra.mxu0 %v737
      %1639 = vmatprep.subr.mxu0 %v735
      %1640 = vmatpush1.msra.mxu0 %v734
      %1641 = vmatprep.subr.mxu0 %v732
      %1642 = vmatpush1.msra.mxu0 %v731
      %1643 = vmatprep.subr.mxu0 %v729
      %1644 = vmatpush1.msra.mxu0 %v728
      %1645 = vmatprep.subr.mxu0 %v726
      %1646 = vmatpush1.msra.mxu0 %v725
      %1647 = vmatprep.subr.mxu0 %v723
      %1648 = vmatpush1.msra.mxu0 %v722
      %1649 = vmatprep.subr.mxu0 %v720
      %1650 = vmatpush1.msra.mxu0 %v719
      %1651 = vmatprep.subr.mxu0 %v717
      %1652 = vmatpush1.msra.mxu0 %v716
      %1653 = vmatprep.subr.mxu0 %v714
      %1654 = vmatpush1.msra.mxu0 %v713
      %1655 = vmatprep.subr.mxu0 %v711
      %1656 = vmatpush1.msra.mxu0 %v710
      %1657 = vmatprep.subr.mxu0 0.0
      %1658 = vmatpush2.msra.mxu0 0.0
      %1659 = vmatprep.subr.mxu0 0.0
      %1660 = vmatpush2.msra.mxu0 0.0
      %1661 = vmatprep.subr.mxu0 0.0
      %1662 = vmatpush2.msra.mxu0 0.0
      %1663 = vmatprep.subr.mxu0 0.0
      %1664 = vmatpush2.msra.mxu0 0.0
      %1665 = vmatprep.subr.mxu0 0.0
      %1666 = vmatpush2.msra.mxu0 0.0
      %1667 = vmatprep.subr.mxu0 0.0
      %1668 = vmatpush2.msra.mxu0 0.0
      %1669 = vmatprep.subr.mxu0 0.0
      %1670 = vmatpush2.msra.mxu0 0.0
      %1671 = vmatprep.subr.mxu0 0.0
      %1672 = vmatpush2.msra.mxu0 0.0
      %1673 = vmatprep.subr.mxu0 0.0
      %1674 = vmatpush2.msra.mxu0 0.0
      %1675 = vmatprep.subr.mxu0 0.0
      %1676 = vmatpush2.msra.mxu0 0.0
      %1677 = vmatprep.subr.mxu0 0.0
      %1678 = vmatpush2.msra.mxu0 0.0
      %1679 = vmatprep.subr.mxu0 0.0
      %1680 = vmatpush2.msra.mxu0 0.0
      %1681 = vmatprep.subr.mxu0 0.0
      %1682 = vmatpush2.msra.mxu0 0.0
      %1683 = vmatprep.subr.mxu0 0.0
      %1684 = vmatpush2.msra.mxu0 0.0
      %1685 = vmatprep.subr.mxu0 0.0
      %1686 = vmatpush2.msra.mxu0 0.0
      %1687 = vmatprep.subr.mxu0 0.0
      %1688 = vmatpush2.msra.mxu0 0.0
      %1689 = vmatprep.mubr.f32.mxu0 0.0
      %1690 = vmatmul.mubr.f32.gmra.mxu0 %v1616
      %v1691 = vpop.f32.mrf.mxu0
      %v1692 = vadd.f32 0.0, %v1691
      %v1693 = vpop.f32.mrf.mxu0
      %v1694 = vadd.f32 0.0, %v1693
      %1695 = vdwg.mxu0
      %1696 = vmatprep.subr.mxu0 0.0
      %1697 = vmatpush1.msra.mxu0 %v757
      %1698 = vmatprep.subr.mxu0 0.0
      %1699 = vmatpush1.msra.mxu0 %v754
      %1700 = vmatprep.subr.mxu0 0.0
      %1701 = vmatpush1.msra.mxu0 %v751
      %1702 = vmatprep.subr.mxu0 0.0
      %1703 = vmatpush1.msra.mxu0 %v748
      %1704 = vmatprep.subr.mxu0 0.0
      %1705 = vmatpush1.msra.mxu0 %v745
      %1706 = vmatprep.subr.mxu0 0.0
      %1707 = vmatpush1.msra.mxu0 %v742
      %1708 = vmatprep.subr.mxu0 0.0
      %1709 = vmatpush1.msra.mxu0 %v739
      %1710 = vmatprep.subr.mxu0 0.0
      %1711 = vmatpush1.msra.mxu0 %v736
      %1712 = vmatprep.subr.mxu0 0.0
      %1713 = vmatpush1.msra.mxu0 %v733
      %1714 = vmatprep.subr.mxu0 0.0
      %1715 = vmatpush1.msra.mxu0 %v730
      %1716 = vmatprep.subr.mxu0 0.0
      %1717 = vmatpush1.msra.mxu0 %v727
      %1718 = vmatprep.subr.mxu0 0.0
      %1719 = vmatpush1.msra.mxu0 %v724
      %1720 = vmatprep.subr.mxu0 0.0
      %1721 = vmatpush1.msra.mxu0 %v721
      %1722 = vmatprep.subr.mxu0 0.0
      %1723 = vmatpush1.msra.mxu0 %v718
      %1724 = vmatprep.subr.mxu0 0.0
      %1725 = vmatpush1.msra.mxu0 %v715
      %1726 = vmatprep.subr.mxu0 0.0
      %1727 = vmatpush1.msra.mxu0 %v712
      %1728 = vmatprep.subr.mxu0 0.0
      %1729 = vmatpush2.msra.mxu0 0.0
      %1730 = vmatprep.subr.mxu0 0.0
      %1731 = vmatpush2.msra.mxu0 0.0
      %1732 = vmatprep.subr.mxu0 0.0
      %1733 = vmatpush2.msra.mxu0 0.0
      %1734 = vmatprep.subr.mxu0 0.0
      %1735 = vmatpush2.msra.mxu0 0.0
      %1736 = vmatprep.subr.mxu0 0.0
      %1737 = vmatpush2.msra.mxu0 0.0
      %1738 = vmatprep.subr.mxu0 0.0
      %1739 = vmatpush2.msra.mxu0 0.0
      %1740 = vmatprep.subr.mxu0 0.0
      %1741 = vmatpush2.msra.mxu0 0.0
      %1742 = vmatprep.subr.mxu0 0.0
      %1743 = vmatpush2.msra.mxu0 0.0
      %1744 = vmatprep.subr.mxu0 0.0
      %1745 = vmatpush2.msra.mxu0 0.0
      %1746 = vmatprep.subr.mxu0 0.0
      %1747 = vmatpush2.msra.mxu0 0.0
      %1748 = vmatprep.subr.mxu0 0.0
      %1749 = vmatpush2.msra.mxu0 0.0
      %1750 = vmatprep.subr.mxu0 0.0
      %1751 = vmatpush2.msra.mxu0 0.0
      %1752 = vmatprep.subr.mxu0 0.0
      %1753 = vmatpush2.msra.mxu0 0.0
      %1754 = vmatprep.subr.mxu0 0.0
      %1755 = vmatpush2.msra.mxu0 0.0
      %1756 = vmatprep.subr.mxu0 0.0
      %1757 = vmatpush2.msra.mxu0 0.0
      %1758 = vmatprep.subr.mxu0 0.0
      %1759 = vmatpush2.msra.mxu0 0.0
      %1760 = vmatprep.mubr.f32.mxu0 0.0
      %1761 = vmatmul.mubr.f32.gmra.mxu0 %v1616
      %v1762 = vpop.f32.mrf.mxu0
      %v1763 = vadd.f32 0.0, %v1762
      %v1764 = vpop.f32.mrf.mxu0
      %1765 = vdwg.mxu0
      %v1766 = vadd.f32 %v1622, %v1692
      %v1767 = vxor.u32 %v1766, 2147483648
      %v1768 = vmul.f32 %v1767, 1.442695
      %v1769 = vpow.pop %v1768
      %v1770 = vadd.f32 %v1769, 1.0
      %v1771 = vrcp.pop %v1770
      %v1772 = vmul.f32 1.0, %v1771
      %v1773 = vadd.f32 %v1623, %v1694
      %v1774 = vxor.u32 %v1773, 2147483648
      %v1775 = vmul.f32 %v1774, 1.442695
      %v1776 = vpow.pop %v1775
      %v1777 = vadd.f32 %v1776, 1.0
      %v1778 = vrcp.pop %v1777
      %v1779 = vmul.f32 1.0, %v1778
      %v1780 = vadd.f32 %v1763, %v763
      %v1781 = vmul.f32 %v1772, %v1780
      %v1782 = vadd.f32 %v1624, %v1781
      %v1783 = vtanh.pop %v1782
      %v1784 = vsub.f32 1.0, %v1779
      %v1785 = vmul.f32 %v1784, %v1783
      %v1786 = vmul.f32 %v1779, %v1616
      %v1787 = vadd.f32 %v1785, %v1786
      %s1788 = scalar_lea.vmem [#allocation3], 40
      %1789 = vst [vmem:[%s1788] sm:$0xff] %v1787
      %s1790 = smul.u32 6, 3
      %s1791 = smul.addr %s1790, 8
      %s1792 = scalar_lea.vmem [#allocation2], %s1791
      %v1793 = vld [vmem:[%s1792] sm:$0xff]
      %v1794 = vld [vmem:[%s1792 + $0x8] sm:$0xff]
      %v1795 = vld [vmem:[%s1792 + $0x10] sm:$0xff]
      %1796 = vmatprep.subr.mxu0 %v756
      %1797 = vmatpush1.msra.mxu0 %v755
      %1798 = vmatprep.subr.mxu0 %v753
      %1799 = vmatpush1.msra.mxu0 %v752
      %1800 = vmatprep.subr.mxu0 %v750
      %1801 = vmatpush1.msra.mxu0 %v749
      %1802 = vmatprep.subr.mxu0 %v747
      %1803 = vmatpush1.msra.mxu0 %v746
      %1804 = vmatprep.subr.mxu0 %v744
      %1805 = vmatpush1.msra.mxu0 %v743
      %1806 = vmatprep.subr.mxu0 %v741
      %1807 = vmatpush1.msra.mxu0 %v740
      %1808 = vmatprep.subr.mxu0 %v738
      %1809 = vmatpush1.msra.mxu0 %v737
      %1810 = vmatprep.subr.mxu0 %v735
      %1811 = vmatpush1.msra.mxu0 %v734
      %1812 = vmatprep.subr.mxu0 %v732
      %1813 = vmatpush1.msra.mxu0 %v731
      %1814 = vmatprep.subr.mxu0 %v729
      %1815 = vmatpush1.msra.mxu0 %v728
      %1816 = vmatprep.subr.mxu0 %v726
      %1817 = vmatpush1.msra.mxu0 %v725
      %1818 = vmatprep.subr.mxu0 %v723
      %1819 = vmatpush1.msra.mxu0 %v722
      %1820 = vmatprep.subr.mxu0 %v720
      %1821 = vmatpush1.msra.mxu0 %v719
      %1822 = vmatprep.subr.mxu0 %v717
      %1823 = vmatpush1.msra.mxu0 %v716
      %1824 = vmatprep.subr.mxu0 %v714
      %1825 = vmatpush1.msra.mxu0 %v713
      %1826 = vmatprep.subr.mxu0 %v711
      %1827 = vmatpush1.msra.mxu0 %v710
      %1828 = vmatprep.subr.mxu0 0.0
      %1829 = vmatpush2.msra.mxu0 0.0
      %1830 = vmatprep.subr.mxu0 0.0
      %1831 = vmatpush2.msra.mxu0 0.0
      %1832 = vmatprep.subr.mxu0 0.0
      %1833 = vmatpush2.msra.mxu0 0.0
      %1834 = vmatprep.subr.mxu0 0.0
      %1835 = vmatpush2.msra.mxu0 0.0
      %1836 = vmatprep.subr.mxu0 0.0
      %1837 = vmatpush2.msra.mxu0 0.0
      %1838 = vmatprep.subr.mxu0 0.0
      %1839 = vmatpush2.msra.mxu0 0.0
      %1840 = vmatprep.subr.mxu0 0.0
      %1841 = vmatpush2.msra.mxu0 0.0
      %1842 = vmatprep.subr.mxu0 0.0
      %1843 = vmatpush2.msra.mxu0 0.0
      %1844 = vmatprep.subr.mxu0 0.0
      %1845 = vmatpush2.msra.mxu0 0.0
      %1846 = vmatprep.subr.mxu0 0.0
      %1847 = vmatpush2.msra.mxu0 0.0
      %1848 = vmatprep.subr.mxu0 0.0
      %1849 = vmatpush2.msra.mxu0 0.0
      %1850 = vmatprep.subr.mxu0 0.0
      %1851 = vmatpush2.msra.mxu0 0.0
      %1852 = vmatprep.subr.mxu0 0.0
      %1853 = vmatpush2.msra.mxu0 0.0
      %1854 = vmatprep.subr.mxu0 0.0
      %1855 = vmatpush2.msra.mxu0 0.0
      %1856 = vmatprep.subr.mxu0 0.0
      %1857 = vmatpush2.msra.mxu0 0.0
      %1858 = vmatprep.subr.mxu0 0.0
      %1859 = vmatpush2.msra.mxu0 0.0
      %1860 = vmatprep.mubr.f32.mxu0 0.0
      %1861 = vmatmul.mubr.f32.gmra.mxu0 %v1787
      %v1862 = vpop.f32.mrf.mxu0
      %v1863 = vadd.f32 0.0, %v1862
      %v1864 = vpop.f32.mrf.mxu0
      %v1865 = vadd.f32 0.0, %v1864
      %1866 = vdwg.mxu0
      %1867 = vmatprep.subr.mxu0 0.0
      %1868 = vmatpush1.msra.mxu0 %v757
      %1869 = vmatprep.subr.mxu0 0.0
      %1870 = vmatpush1.msra.mxu0 %v754
      %1871 = vmatprep.subr.mxu0 0.0
      %1872 = vmatpush1.msra.mxu0 %v751
      %1873 = vmatprep.subr.mxu0 0.0
      %1874 = vmatpush1.msra.mxu0 %v748
      %1875 = vmatprep.subr.mxu0 0.0
      %1876 = vmatpush1.msra.mxu0 %v745
      %1877 = vmatprep.subr.mxu0 0.0
      %1878 = vmatpush1.msra.mxu0 %v742
      %1879 = vmatprep.subr.mxu0 0.0
      %1880 = vmatpush1.msra.mxu0 %v739
      %1881 = vmatprep.subr.mxu0 0.0
      %1882 = vmatpush1.msra.mxu0 %v736
      %1883 = vmatprep.subr.mxu0 0.0
      %1884 = vmatpush1.msra.mxu0 %v733
      %1885 = vmatprep.subr.mxu0 0.0
      %1886 = vmatpush1.msra.mxu0 %v730
      %1887 = vmatprep.subr.mxu0 0.0
      %1888 = vmatpush1.msra.mxu0 %v727
      %1889 = vmatprep.subr.mxu0 0.0
      %1890 = vmatpush1.msra.mxu0 %v724
      %1891 = vmatprep.subr.mxu0 0.0
      %1892 = vmatpush1.msra.mxu0 %v721
      %1893 = vmatprep.subr.mxu0 0.0
      %1894 = vmatpush1.msra.mxu0 %v718
      %1895 = vmatprep.subr.mxu0 0.0
      %1896 = vmatpush1.msra.mxu0 %v715
      %1897 = vmatprep.subr.mxu0 0.0
      %1898 = vmatpush1.msra.mxu0 %v712
      %1899 = vmatprep.subr.mxu0 0.0
      %1900 = vmatpush2.msra.mxu0 0.0
      %1901 = vmatprep.subr.mxu0 0.0
      %1902 = vmatpush2.msra.mxu0 0.0
      %1903 = vmatprep.subr.mxu0 0.0
      %1904 = vmatpush2.msra.mxu0 0.0
      %1905 = vmatprep.subr.mxu0 0.0
      %1906 = vmatpush2.msra.mxu0 0.0
      %1907 = vmatprep.subr.mxu0 0.0
      %1908 = vmatpush2.msra.mxu0 0.0
      %1909 = vmatprep.subr.mxu0 0.0
      %1910 = vmatpush2.msra.mxu0 0.0
      %1911 = vmatprep.subr.mxu0 0.0
      %1912 = vmatpush2.msra.mxu0 0.0
      %1913 = vmatprep.subr.mxu0 0.0
      %1914 = vmatpush2.msra.mxu0 0.0
      %1915 = vmatprep.subr.mxu0 0.0
      %1916 = vmatpush2.msra.mxu0 0.0
      %1917 = vmatprep.subr.mxu0 0.0
      %1918 = vmatpush2.msra.mxu0 0.0
      %1919 = vmatprep.subr.mxu0 0.0
      %1920 = vmatpush2.msra.mxu0 0.0
      %1921 = vmatprep.subr.mxu0 0.0
      %1922 = vmatpush2.msra.mxu0 0.0
      %1923 = vmatprep.subr.mxu0 0.0
      %1924 = vmatpush2.msra.mxu0 0.0
      %1925 = vmatprep.subr.mxu0 0.0
      %1926 = vmatpush2.msra.mxu0 0.0
      %1927 = vmatprep.subr.mxu0 0.0
      %1928 = vmatpush2.msra.mxu0 0.0
      %1929 = vmatprep.subr.mxu0 0.0
      %1930 = vmatpush2.msra.mxu0 0.0
      %1931 = vmatprep.mubr.f32.mxu0 0.0
      %1932 = vmatmul.mubr.f32.gmra.mxu0 %v1787
      %v1933 = vpop.f32.mrf.mxu0
      %v1934 = vadd.f32 0.0, %v1933
      %v1935 = vpop.f32.mrf.mxu0
      %1936 = vdwg.mxu0
      %v1937 = vadd.f32 %v1793, %v1863
      %v1938 = vxor.u32 %v1937, 2147483648
      %v1939 = vmul.f32 %v1938, 1.442695
      %v1940 = vpow.pop %v1939
      %v1941 = vadd.f32 %v1940, 1.0
      %v1942 = vrcp.pop %v1941
      %v1943 = vmul.f32 1.0, %v1942
      %v1944 = vadd.f32 %v1794, %v1865
      %v1945 = vxor.u32 %v1944, 2147483648
      %v1946 = vmul.f32 %v1945, 1.442695
      %v1947 = vpow.pop %v1946
      %v1948 = vadd.f32 %v1947, 1.0
      %v1949 = vrcp.pop %v1948
      %v1950 = vmul.f32 1.0, %v1949
      %v1951 = vadd.f32 %v1934, %v763
      %v1952 = vmul.f32 %v1943, %v1951
      %v1953 = vadd.f32 %v1795, %v1952
      %v1954 = vtanh.pop %v1953
      %v1955 = vsub.f32 1.0, %v1950
      %v1956 = vmul.f32 %v1955, %v1954
      %v1957 = vmul.f32 %v1950, %v1787
      %v1958 = vadd.f32 %v1956, %v1957
      %s1959 = scalar_lea.vmem [#allocation3], 48
      %1960 = vst [vmem:[%s1959] sm:$0xff] %v1958
      %s1961 = smul.u32 7, 3
      %s1962 = smul.addr %s1961, 8
      %s1963 = scalar_lea.vmem [#allocation2], %s1962
      %v1964 = vld [vmem:[%s1963] sm:$0xff]
      %v1965 = vld [vmem:[%s1963 + $0x8] sm:$0xff]
      %v1966 = vld [vmem:[%s1963 + $0x10] sm:$0xff]
      %1967 = vmatprep.subr.mxu0 %v756
      %1968 = vmatpush1.msra.mxu0 %v755
      %1969 = vmatprep.subr.mxu0 %v753
      %1970 = vmatpush1.msra.mxu0 %v752
      %1971 = vmatprep.subr.mxu0 %v750
      %1972 = vmatpush1.msra.mxu0 %v749
      %1973 = vmatprep.subr.mxu0 %v747
      %1974 = vmatpush1.msra.mxu0 %v746
      %1975 = vmatprep.subr.mxu0 %v744
      %1976 = vmatpush1.msra.mxu0 %v743
      %1977 = vmatprep.subr.mxu0 %v741
      %1978 = vmatpush1.msra.mxu0 %v740
      %1979 = vmatprep.subr.mxu0 %v738
      %1980 = vmatpush1.msra.mxu0 %v737
      %1981 = vmatprep.subr.mxu0 %v735
      %1982 = vmatpush1.msra.mxu0 %v734
      %1983 = vmatprep.subr.mxu0 %v732
      %1984 = vmatpush1.msra.mxu0 %v731
      %1985 = vmatprep.subr.mxu0 %v729
      %1986 = vmatpush1.msra.mxu0 %v728
      %1987 = vmatprep.subr.mxu0 %v726
      %1988 = vmatpush1.msra.mxu0 %v725
      %1989 = vmatprep.subr.mxu0 %v723
      %1990 = vmatpush1.msra.mxu0 %v722
      %1991 = vmatprep.subr.mxu0 %v720
      %1992 = vmatpush1.msra.mxu0 %v719
      %1993 = vmatprep.subr.mxu0 %v717
      %1994 = vmatpush1.msra.mxu0 %v716
      %1995 = vmatprep.subr.mxu0 %v714
      %1996 = vmatpush1.msra.mxu0 %v713
      %1997 = vmatprep.subr.mxu0 %v711
      %1998 = vmatpush1.msra.mxu0 %v710
      %1999 = vmatprep.subr.mxu0 0.0
      %2000 = vmatpush2.msra.mxu0 0.0
      %2001 = vmatprep.subr.mxu0 0.0
      %2002 = vmatpush2.msra.mxu0 0.0
      %2003 = vmatprep.subr.mxu0 0.0
      %2004 = vmatpush2.msra.mxu0 0.0
      %2005 = vmatprep.subr.mxu0 0.0
      %2006 = vmatpush2.msra.mxu0 0.0
      %2007 = vmatprep.subr.mxu0 0.0
      %2008 = vmatpush2.msra.mxu0 0.0
      %2009 = vmatprep.subr.mxu0 0.0
      %2010 = vmatpush2.msra.mxu0 0.0
      %2011 = vmatprep.subr.mxu0 0.0
      %2012 = vmatpush2.msra.mxu0 0.0
      %2013 = vmatprep.subr.mxu0 0.0
      %2014 = vmatpush2.msra.mxu0 0.0
      %2015 = vmatprep.subr.mxu0 0.0
      %2016 = vmatpush2.msra.mxu0 0.0
      %2017 = vmatprep.subr.mxu0 0.0
      %2018 = vmatpush2.msra.mxu0 0.0
      %2019 = vmatprep.subr.mxu0 0.0
      %2020 = vmatpush2.msra.mxu0 0.0
      %2021 = vmatprep.subr.mxu0 0.0
      %2022 = vmatpush2.msra.mxu0 0.0
      %2023 = vmatprep.subr.mxu0 0.0
      %2024 = vmatpush2.msra.mxu0 0.0
      %2025 = vmatprep.subr.mxu0 0.0
      %2026 = vmatpush2.msra.mxu0 0.0
      %2027 = vmatprep.subr.mxu0 0.0
      %2028 = vmatpush2.msra.mxu0 0.0
      %2029 = vmatprep.subr.mxu0 0.0
      %2030 = vmatpush2.msra.mxu0 0.0
      %2031 = vmatprep.mubr.f32.mxu0 0.0
      %2032 = vmatmul.mubr.f32.gmra.mxu0 %v1958
      %v2033 = vpop.f32.mrf.mxu0
      %v2034 = vadd.f32 0.0, %v2033
      %v2035 = vpop.f32.mrf.mxu0
      %v2036 = vadd.f32 0.0, %v2035
      %2037 = vdwg.mxu0
      %2038 = vmatprep.subr.mxu0 0.0
      %2039 = vmatpush1.msra.mxu0 %v757
      %2040 = vmatprep.subr.mxu0 0.0
      %2041 = vmatpush1.msra.mxu0 %v754
      %2042 = vmatprep.subr.mxu0 0.0
      %2043 = vmatpush1.msra.mxu0 %v751
      %2044 = vmatprep.subr.mxu0 0.0
      %2045 = vmatpush1.msra.mxu0 %v748
      %2046 = vmatprep.subr.mxu0 0.0
      %2047 = vmatpush1.msra.mxu0 %v745
      %2048 = vmatprep.subr.mxu0 0.0
      %2049 = vmatpush1.msra.mxu0 %v742
      %2050 = vmatprep.subr.mxu0 0.0
      %2051 = vmatpush1.msra.mxu0 %v739
      %2052 = vmatprep.subr.mxu0 0.0
      %2053 = vmatpush1.msra.mxu0 %v736
      %2054 = vmatprep.subr.mxu0 0.0
      %2055 = vmatpush1.msra.mxu0 %v733
      %2056 = vmatprep.subr.mxu0 0.0
      %2057 = vmatpush1.msra.mxu0 %v730
      %2058 = vmatprep.subr.mxu0 0.0
      %2059 = vmatpush1.msra.mxu0 %v727
      %2060 = vmatprep.subr.mxu0 0.0
      %2061 = vmatpush1.msra.mxu0 %v724
      %2062 = vmatprep.subr.mxu0 0.0
      %2063 = vmatpush1.msra.mxu0 %v721
      %2064 = vmatprep.subr.mxu0 0.0
      %2065 = vmatpush1.msra.mxu0 %v718
      %2066 = vmatprep.subr.mxu0 0.0
      %2067 = vmatpush1.msra.mxu0 %v715
      %2068 = vmatprep.subr.mxu0 0.0
      %2069 = vmatpush1.msra.mxu0 %v712
      %2070 = vmatprep.subr.mxu0 0.0
      %2071 = vmatpush2.msra.mxu0 0.0
      %2072 = vmatprep.subr.mxu0 0.0
      %2073 = vmatpush2.msra.mxu0 0.0
      %2074 = vmatprep.subr.mxu0 0.0
      %2075 = vmatpush2.msra.mxu0 0.0
      %2076 = vmatprep.subr.mxu0 0.0
      %2077 = vmatpush2.msra.mxu0 0.0
      %2078 = vmatprep.subr.mxu0 0.0
      %2079 = vmatpush2.msra.mxu0 0.0
      %2080 = vmatprep.subr.mxu0 0.0
      %2081 = vmatpush2.msra.mxu0 0.0
      %2082 = vmatprep.subr.mxu0 0.0
      %2083 = vmatpush2.msra.mxu0 0.0
      %2084 = vmatprep.subr.mxu0 0.0
      %2085 = vmatpush2.msra.mxu0 0.0
      %2086 = vmatprep.subr.mxu0 0.0
      %2087 = vmatpush2.msra.mxu0 0.0
      %2088 = vmatprep.subr.mxu0 0.0
      %2089 = vmatpush2.msra.mxu0 0.0
      %2090 = vmatprep.subr.mxu0 0.0
      %2091 = vmatpush2.msra.mxu0 0.0
      %2092 = vmatprep.subr.mxu0 0.0
      %2093 = vmatpush2.msra.mxu0 0.0
      %2094 = vmatprep.subr.mxu0 0.0
      %2095 = vmatpush2.msra.mxu0 0.0
      %2096 = vmatprep.subr.mxu0 0.0
      %2097 = vmatpush2.msra.mxu0 0.0
      %2098 = vmatprep.subr.mxu0 0.0
      %2099 = vmatpush2.msra.mxu0 0.0
      %2100 = vmatprep.subr.mxu0 0.0
      %2101 = vmatpush2.msra.mxu0 0.0
      %2102 = vmatprep.mubr.f32.mxu0 0.0
      %2103 = vmatmul.mubr.f32.gmra.mxu0 %v1958
      %v2104 = vpop.f32.mrf.mxu0
      %v2105 = vadd.f32 0.0, %v2104
      %v2106 = vpop.f32.mrf.mxu0
      %2107 = vdwg.mxu0
      %v2108 = vadd.f32 %v1964, %v2034
      %v2109 = vxor.u32 %v2108, 2147483648
      %v2110 = vmul.f32 %v2109, 1.442695
      %v2111 = vpow.pop %v2110
      %v2112 = vadd.f32 %v2111, 1.0
      %v2113 = vrcp.pop %v2112
      %v2114 = vmul.f32 1.0, %v2113
      %v2115 = vadd.f32 %v1965, %v2036
      %v2116 = vxor.u32 %v2115, 2147483648
      %v2117 = vmul.f32 %v2116, 1.442695
      %v2118 = vpow.pop %v2117
      %v2119 = vadd.f32 %v2118, 1.0
      %v2120 = vrcp.pop %v2119
      %v2121 = vmul.f32 1.0, %v2120
      %v2122 = vadd.f32 %v2105, %v763
      %v2123 = vmul.f32 %v2114, %v2122
      %v2124 = vadd.f32 %v1966, %v2123
      %v2125 = vtanh.pop %v2124
      %v2126 = vsub.f32 1.0, %v2121
      %v2127 = vmul.f32 %v2126, %v2125
      %v2128 = vmul.f32 %v2121, %v1958
      %v2129 = vadd.f32 %v2127, %v2128
      %s2130 = scalar_lea.vmem [#allocation3], 56
      %2131 = vst [vmem:[%s2130] sm:$0xff] %v2129
      %v2132 = vld [vmem:[#allocation3] sm:$0xff]
      %v2133 = vld [vmem:[#allocation3 + $0x8] sm:$0xff]
      %v2134 = vld [vmem:[#allocation3 + $0x10] sm:$0xff]
      %v2135 = vld [vmem:[#allocation3 + $0x18] sm:$0xff]
      %v2136 = vld [vmem:[#allocation3 + $0x20] sm:$0xff]
      %v2137 = vld [vmem:[#allocation3 + $0x28] sm:$0xff]
      %v2138 = vld [vmem:[#allocation3 + $0x30] sm:$0xff]
      %v2139 = vld [vmem:[#allocation3 + $0x38] sm:$0xff]
      %v2140 = vpack.c.bf16 %v2133, %v2132
      %v2141 = vpack.c.bf16 %v2135, %v2134
      %v2142 = vpack.c.bf16 %v2137, %v2136
      %v2143 = vpack.c.bf16 %v2139, %v2138
      %v2144 = vld [vmem:[%s7] sm:$0xf]
      %v2145 = vld [vmem:[%s7 + $0x4] sm:$0xf]
      %v2146 = vld [vmem:[%s7 + $0x8] sm:$0xf]
      %v2147 = vld [vmem:[%s7 + $0xc] sm:$0xf]
      %v2148 = vld [vmem:[%s7 + $0x10] sm:$0xf]
      %v2149 = vld [vmem:[%s7 + $0x14] sm:$0xf]
      %v2150 = vld [vmem:[%s7 + $0x18] sm:$0xf]
      %v2151 = vld [vmem:[%s7 + $0x1c] sm:$0xf]
      %v2152 = vld [vmem:[%s7 + $0x20] sm:$0xf]
      %v2153 = vld [vmem:[%s7 + $0x24] sm:$0xf]
      %v2154 = vld [vmem:[%s7 + $0x28] sm:$0xf]
      %v2155 = vld [vmem:[%s7 + $0x2c] sm:$0xf]
      %v2156 = vld [vmem:[%s7 + $0x30] sm:$0xf]
      %v2157 = vld [vmem:[%s7 + $0x34] sm:$0xf]
      %v2158 = vld [vmem:[%s7 + $0x38] sm:$0xf]
      %v2159 = vld [vmem:[%s7 + $0x3c] sm:$0xf]
      %v2160 = vld [vmem:[%s8] sm:$0x1]
      %v2162 = vlaneseq
      %v2163 = vshrl.u32 %v2162, 7
      %v2164 = vsub.s32 0, %v2163
      %v2165 = vrot.slane %v2160, %v2164
      %v2183 = vunpack.c.l.b16 %v2144
      %v2184 = vunpack.c.l.b16 %v2145
      %v2185 = vunpack.c.l.b16 %v2146
      %v2186 = vunpack.c.l.b16 %v2147
      %v2187 = vunpack.c.l.b16 %v2148
      %v2188 = vunpack.c.l.b16 %v2149
      %v2189 = vunpack.c.l.b16 %v2150
      %v2190 = vunpack.c.l.b16 %v2151
      %v2191 = vunpack.c.l.b16 %v2152
      %v2192 = vunpack.c.l.b16 %v2153
      %v2193 = vunpack.c.l.b16 %v2154
      %v2194 = vunpack.c.l.b16 %v2155
      %v2195 = vunpack.c.l.b16 %v2156
      %v2196 = vunpack.c.l.b16 %v2157
      %v2197 = vunpack.c.l.b16 %v2158
      %v2198 = vunpack.c.l.b16 %v2159
      %v2199 = vpack.c.b16 %v2184, %v2183
      %v2200 = vpack.c.b16 %v2186, %v2185
      %v2201 = vpack.c.b16 %v2188, %v2187
      %v2202 = vpack.c.b16 %v2190, %v2189
      %v2203 = vpack.c.b16 %v2192, %v2191
      %v2204 = vpack.c.b16 %v2194, %v2193
      %v2205 = vpack.c.b16 %v2196, %v2195
      %v2206 = vpack.c.b16 %v2198, %v2197
      %2215 = vmatprep.subr.bf16.mxu0 0
      %2216 = vmatpush1.bf16.msra.mxu0 %v2206
      %2217 = vmatprep.subr.bf16.mxu0 0
      %2218 = vmatpush1.bf16.msra.mxu0 %v2205
      %2219 = vmatprep.subr.bf16.mxu0 0
      %2220 = vmatpush1.bf16.msra.mxu0 %v2204
      %2221 = vmatprep.subr.bf16.mxu0 0
      %2222 = vmatpush1.bf16.msra.mxu0 %v2203
      %2223 = vmatprep.subr.bf16.mxu0 0
      %2224 = vmatpush1.bf16.msra.mxu0 %v2202
      %2225 = vmatprep.subr.bf16.mxu0 0
      %2226 = vmatpush1.bf16.msra.mxu0 %v2201
      %2227 = vmatprep.subr.bf16.mxu0 0
      %2228 = vmatpush1.bf16.msra.mxu0 %v2200
      %2229 = vmatprep.subr.bf16.mxu0 0
      %2230 = vmatpush1.bf16.msra.mxu0 %v2199
      %2231 = vmatprep.subr.bf16.mxu0 0
      %2232 = vmatpush2.bf16.msra.mxu0 0
      %2233 = vmatprep.subr.bf16.mxu0 0
      %2234 = vmatpush2.bf16.msra.mxu0 0
      %2235 = vmatprep.subr.bf16.mxu0 0
      %2236 = vmatpush2.bf16.msra.mxu0 0
      %2237 = vmatprep.subr.bf16.mxu0 0
      %2238 = vmatpush2.bf16.msra.mxu0 0
      %2239 = vmatprep.subr.bf16.mxu0 0
      %2240 = vmatpush2.bf16.msra.mxu0 0
      %2241 = vmatprep.subr.bf16.mxu0 0
      %2242 = vmatpush2.bf16.msra.mxu0 0
      %2243 = vmatprep.subr.bf16.mxu0 0
      %2244 = vmatpush2.bf16.msra.mxu0 0
      %2245 = vmatprep.subr.bf16.mxu0 0
      %2246 = vmatpush2.bf16.msra.mxu0 0
      %2247 = vmatprep.mubr.bf16.mxu0 0
      %2248 = vmatmul.mubr.bf16.gmra.mxu0 %v2140
      %v2249 = vpop.f32.mrf.mxu0
      %v2250 = vadd.f32 %v2165, %v2249
      %v2251 = vpop.f32.mrf.mxu0
      %v2252 = vpop.f32.mrf.mxu0
      %v2253 = vadd.f32 %v2165, %v2252
      %v2254 = vpop.f32.mrf.mxu0
      %2255 = vmatprep.mubr.bf16.mxu0 0
      %2256 = vmatmul.mubr.bf16.gmra.mxu0 %v2141
      %v2257 = vpop.f32.mrf.mxu0
      %v2258 = vadd.f32 %v2165, %v2257
      %v2259 = vpop.f32.mrf.mxu0
      %v2260 = vpop.f32.mrf.mxu0
      %v2261 = vadd.f32 %v2165, %v2260
      %v2262 = vpop.f32.mrf.mxu0
      %2263 = vmatprep.mubr.bf16.mxu0 0
      %2264 = vmatmul.mubr.bf16.gmra.mxu0 %v2142
      %v2265 = vpop.f32.mrf.mxu0
      %v2266 = vadd.f32 %v2165, %v2265
      %v2267 = vpop.f32.mrf.mxu0
      %v2268 = vpop.f32.mrf.mxu0
      %v2269 = vadd.f32 %v2165, %v2268
      %v2270 = vpop.f32.mrf.mxu0
      %2271 = vmatprep.mubr.bf16.mxu0 0
      %2272 = vmatmul.mubr.bf16.gmra.mxu0 %v2143
      %v2273 = vpop.f32.mrf.mxu0
      %v2274 = vadd.f32 %v2165, %v2273
      %v2275 = vpop.f32.mrf.mxu0
      %v2276 = vpop.f32.mrf.mxu0
      %v2277 = vadd.f32 %v2165, %v2276
      %v2278 = vpop.f32.mrf.mxu0
      %2279 = vdwg.mxu0
      %2280 = vst [vmem:[%s334] sm:$0xff] %v2250
      %2281 = vst [vmem:[%s334 + $0x8] sm:$0xff] %v2253
      %2282 = vst [vmem:[%s334 + $0x10] sm:$0xff] %v2258
      %2283 = vst [vmem:[%s334 + $0x18] sm:$0xff] %v2261
      %2284 = vst [vmem:[%s334 + $0x20] sm:$0xff] %v2266
      %2285 = vst [vmem:[%s334 + $0x28] sm:$0xff] %v2269
      %2286 = vst [vmem:[%s334 + $0x30] sm:$0xff] %v2274
      %2287 = vst [vmem:[%s334 + $0x38] sm:$0xff] %v2277
      %s2288 = smul.u32 8, %s20
      %p2289 = scmp.lt.s32.totalorder %s2288, 23
      %s2290 = scalar_select %p2289, %s2288, 23
      %s2291 = smul.addr %s2290, 8
      %s2292 = scalar_lea.vmem %s9, %s2291
      // Predicated region
      $region57: #{encoder_forward.1} parent=55 // pred_check
        %p2293 = pneg %p232
      $region58: #{encoder_forward.1} parent=55 // pred_check_branch
        %2295 = sbr.rel (%p2293) target = $region60
      $region59: #{encoder_forward.1} parent=55 // pred_region
        %s2296 = smul.u32 8, %s20
      $region60: #{encoder_forward.1} parent=55 // pred_fallthru
        _
    $region56: #{encoder_forward.1} parent=5 // pred_fallthru
      _
    %p2297 = scmp.le.s32.totalorder 2, %s15
    // Predicated region
    $region61: #{encoder_forward.1} parent=5 // pred_check
      %p2298 = pneg %p2297
    $region62: #{encoder_forward.1} parent=5 // pred_check_branch
      %2300 = sbr.rel (%p2298) target = $region64
    $region63: #{encoder_forward.1} parent=5 // pred_region
      %s2301 = ssub.s32 %s15, 2
      // Predicated region
      $region65: #{encoder_forward.1} parent=63 // pred_check
        %p2302 = pneg %p238
      $region66: #{encoder_forward.1} parent=63 // pred_check_branch
        %2304 = sbr.rel (%p2302) target = $region68
      $region67: #{encoder_forward.1} parent=63 // pred_region
        %s2305 = smul.u32 8, %s21
        %p2306 = scmp.lt.s32.totalorder %s2305, 23
        %s2307 = scalar_select %p2306, %s2305, 23
        %s2308 = smul.addr %s2307, 8
        %s2309 = scalar_lea.vmem %s9, %s2308
      $region68: #{encoder_forward.1} parent=63 // pred_fallthru
        _
    $region64: #{encoder_forward.1} parent=5 // pred_fallthru
      _
  $region6: #{encoder_forward.1} parent=0 // loop_footer
    %s19 = sadd.s32 1, %s15
  $region7: #{encoder_forward.1} parent=0 // loop_footer_branch
    %14 = sbr.rel target = $region3
  $region8: #{encoder_forward.1} parent=0 // loop_exit
    _

</llo_original>
